<compile_context>
chip_gen: v6e
topology: v6e:2x2x1
jax: 0.10.0
libtpu: 0.0.40
codegen_flags: <defaults>
</compile_context>

<pallas_src>
import math
import functools

import jax
import jax.numpy as jnp
import numpy as np
from jax.experimental import pallas as pl
from jax.experimental.pallas import tpu as pltpu


def _round_up(a, b):
    return (a + b - 1) // b * b


def mha_kernel(x_ref, wq_ref, wk_ref, wv_ref, bq_ref, bk_ref, bv_ref,
               wo_ref, bo_ref, o_ref, k_scr, v_scr,
               *, num_heads, head_dim, seq_len, q_tile, approx_recip):
    """Grid = (batch, query_tiles).

    x_ref   : (1, S_pad, D)       VMEM (compute dtype)
    wq_ref  : (D, E)              VMEM (1/sqrt(hd) folded in)
    wk_ref  : (D, E)              VMEM
    wv_ref  : (D, E)              VMEM
    b*_ref  : (1, E)              VMEM
    wo_ref  : (E, E_pad)          VMEM (wo^T, output cols padded lane-dense)
    bo_ref  : (1, E_pad)          VMEM
    o_ref   : (1, q_tile, E_pad)  VMEM
    k_scr   : (S_pad, E)          VMEM scratch, lane-dense, persists across qt
    v_scr   : (S_pad, E)          VMEM scratch, lane-dense, persists across qt
    """
    H, hd = num_heads, head_dim
    S_pad = k_scr.shape[0]
    E_pad = o_ref.shape[2]
    qt = pl.program_id(1)
    cdt = k_scr.dtype                       # MXU operand dtype (f32 or bf16)

    # ---- Phase 1 (once per batch element): full-sequence K/V projection ----
    # Two plain matmuls, two full unmasked stores into lane-dense scratch.
    @pl.when(qt == 0)
    def _():
        x_full = x_ref[0]                                          # (S_pad, D)
        k = jnp.dot(x_full, wk_ref[...], preferred_element_type=jnp.float32)
        k_scr[...] = (k + bk_ref[0].astype(jnp.float32)).astype(cdt)
        v = jnp.dot(x_full, wv_ref[...], preferred_element_type=jnp.float32)
        v_scr[...] = (v + bv_ref[0].astype(jnp.float32)).astype(cdt)

    # ---- Phase 2: attention for this query tile ----
    # Q rows are projected here (no Q scratch); scale is already folded in.
    if q_tile == S_pad:                     # single tile: static full read
        x_t = x_ref[0]                                             # (TQ, D)
    else:
        q_start = pl.multiple_of(qt * q_tile, q_tile)
        x_t = x_ref[0, pl.ds(q_start, q_tile), :]                  # (TQ, D)
    qa = jnp.dot(x_t, wq_ref[...], preferred_element_type=jnp.float32)
    qa = (qa + bq_ref[0].astype(jnp.float32)).astype(cdt)          # (TQ, E)

    acc = jnp.zeros((q_tile, E_pad), jnp.float32)
    # Static per-head loop: keeps only one head's (TQ, S_pad) softmax
    # intermediates live; output projection accumulates into one f32 buffer.
    for h in range(H):
        lo, hi = h * hd, (h + 1) * hd
        qh = qa[:, lo:hi]                                          # (TQ, hd)
        kh = k_scr[:, lo:hi]                                       # (S_pad, hd)
        logits = jax.lax.dot_general(
            qh, kh, dimension_numbers=(((1,), (1,)), ((), ())),
            preferred_element_type=jnp.float32)                    # (TQ, S_pad)

        if S_pad != seq_len:                # static: mask padded keys
            key_ids = jax.lax.broadcasted_iota(jnp.int32, logits.shape, 1)
            logits = jnp.where(key_ids >= seq_len, -1e30, logits)

        logits = logits - jnp.max(logits, axis=-1, keepdims=True)
        p = jnp.exp(logits)
        p = p * pl.reciprocal(jnp.sum(p, axis=-1, keepdims=True),
                              approx=approx_recip)

        vals = jnp.dot(p.astype(cdt), v_scr[:, lo:hi],
                       preferred_element_type=jnp.float32)         # (TQ, hd)
        acc = acc + jnp.dot(vals.astype(cdt), wo_ref[lo:hi, :],
                            preferred_element_type=jnp.float32)    # (TQ, E_pad)

    o_ref[0] = (acc + bo_ref[0].astype(jnp.float32)).astype(o_ref.dtype)


def multihead_attention(x, wqkv, bqkv, wo, bo, *, num_heads,
                        compute_dtype=jnp.bfloat16):
    """Forward pass of the SRAttn MultiheadAttention module.

    x    : (B, S, D)
    wqkv : (3E, D)  == qkv_proj.weight (PyTorch layout, per-head interleaved)
    bqkv : (3E,)    == qkv_proj.bias
    wo   : (E, E)   == o_proj.weight
    bo   : (E,)     == o_proj.bias
    """
    B, S, D = x.shape
    three_e = wqkv.shape[0]
    E = three_e // 3
    H = num_heads
    assert E % H == 0
    hd = E // H

    # --- static tiling ---
    S8 = _round_up(S, 8)
    q_tile = min(256, S8)                   # larger tiles amortize step overhead
    S_pad = _round_up(S8, q_tile)
    E_pad = _round_up(E, 128)               # lane-dense output width
    n_q_tiles = S_pad // q_tile

    # --- wrapper-side one-time weight regrouping / padding / casting ---
    # Split the per-head-interleaved [q|k|v]*H rows into three separate
    # head-concatenated weights (each slab lane-aligned at offset 0).
    idx = np.arange(3 * E).reshape(H, 3, hd)
    q_idx = idx[:, 0, :].reshape(-1)
    k_idx = idx[:, 1, :].reshape(-1)
    v_idx = idx[:, 2, :].reshape(-1)
    scale = 1.0 / math.sqrt(hd)             # fold attention scale into Q
    wq = (jnp.transpose(wqkv[q_idx]) * scale).astype(compute_dtype)   # (D, E)
    wk = jnp.transpose(wqkv[k_idx]).astype(compute_dtype)             # (D, E)
    wv = jnp.transpose(wqkv[v_idx]).astype(compute_dtype)             # (D, E)
    bq = (bqkv[q_idx] * scale).reshape(1, E).astype(compute_dtype)
    bk = bqkv[k_idx].reshape(1, E).astype(compute_dtype)
    bv = bqkv[v_idx].reshape(1, E).astype(compute_dtype)
    # Output projection as wo^T with lane-dense padded output columns.
    wo_t = jnp.pad(jnp.transpose(wo), ((0, 0), (0, E_pad - E))).astype(compute_dtype)
    bo_p = jnp.pad(bo, (0, E_pad - E)).reshape(1, E_pad).astype(compute_dtype)
    # Pad sequence to the tile multiple; cast MXU operands to compute dtype.
    x_p = jnp.pad(x, ((0, 0), (0, S_pad - S), (0, 0))).astype(compute_dtype)

    approx_recip = bool(jnp.dtype(compute_dtype) != jnp.dtype(jnp.float32))
    kernel = functools.partial(mha_kernel, num_heads=H, head_dim=hd,
                               seq_len=S, q_tile=q_tile,
                               approx_recip=approx_recip)

    # --- generation-aware VMEM budget ---
    itemsize = jnp.dtype(compute_dtype).itemsize
    out_isize = jnp.dtype(x.dtype).itemsize
    E_lane = _round_up(E, 128)
    D_lane = _round_up(D, 128)
    S_lane = _round_up(S_pad, 128)
    footprint = (
        2 * (3 * D * E_lane + 3 * E_lane + E * E_pad + E_pad) * itemsize  # weights (dbl-buf)
        + 2 * S_pad * D_lane * itemsize                                   # x block
        + 2 * q_tile * E_pad * out_isize                                  # out block
        + 2 * S_pad * E_lane * itemsize                                   # K/V scratch
        + q_tile * E_lane * itemsize                                      # q tile
        + 3 * q_tile * S_lane * 4                                         # live softmax temps
        + q_tile * E_pad * 4)                                             # out accumulator
    try:
        vmem_cap = int(pltpu.get_tpu_info().vmem_capacity_bytes)
    except Exception:
        vmem_cap = 64 * 1024 * 1024         # conservative (v7x per-TC size)
    vmem_limit = int(max(32 * 1024 * 1024, 2 * footprint))
    vmem_limit = int(min(vmem_limit, (vmem_cap * 7) // 8))  # leave headroom

    cost = pl.CostEstimate(
        flops=(2 * B * S_pad * D * 3 * E          # q/k/v projections
               + 4 * B * S_pad * S_pad * E        # QK^T and PV
               + 2 * B * S_pad * E * E_pad),      # output projection
        transcendentals=B * H * S_pad * S_pad,
        bytes_accessed=int((x_p.size + wq.size + wk.size + wv.size
                            + wo_t.size) * itemsize
                           + B * S_pad * E_pad * out_isize))

    out = pl.pallas_call(
        kernel,
        out_shape=jax.ShapeDtypeStruct((B, S_pad, E_pad), x.dtype),
        grid_spec=pltpu.PrefetchScalarGridSpec(
            num_scalar_prefetch=0,
            grid=(B, n_q_tiles),
            in_specs=[
                pl.BlockSpec((1, S_pad, D), lambda b, qt: (b, 0, 0)),
                pl.BlockSpec((D, E), lambda b, qt: (0, 0)),
                pl.BlockSpec((D, E), lambda b, qt: (0, 0)),
                pl.BlockSpec((D, E), lambda b, qt: (0, 0)),
                pl.BlockSpec((1, E), lambda b, qt: (0, 0)),
                pl.BlockSpec((1, E), lambda b, qt: (0, 0)),
                pl.BlockSpec((1, E), lambda b, qt: (0, 0)),
                pl.BlockSpec((E, E_pad), lambda b, qt: (0, 0)),
                pl.BlockSpec((1, E_pad), lambda b, qt: (0, 0)),
            ],
            out_specs=pl.BlockSpec((1, q_tile, E_pad), lambda b, qt: (b, qt, 0)),
            scratch_shapes=[
                pltpu.VMEM((S_pad, E), compute_dtype),   # K (lane-dense)
                pltpu.VMEM((S_pad, E), compute_dtype),   # V (lane-dense)
            ],
        ),
        compiler_params=pltpu.CompilerParams(
            dimension_semantics=("parallel", "arbitrary"),
            vmem_limit_bytes=vmem_limit,
        ),
        cost_estimate=cost,
    )(x_p, wq, wk, wv, bq, bk, bv, wo_t, bo_p)

    return out[:, :S, :E]


def xavier_uniform(key, fan_out, fan_in, dtype=jnp.float32):
    # Matches nn.init.xavier_uniform_ on a (fan_out, fan_in) weight.
    bound = math.sqrt(6.0 / (fan_in + fan_out))
    return jax.random.uniform(key, (fan_out, fan_in), dtype, minval=-bound, maxval=bound)


def reference_forward(x, wqkv, bqkv, wo, bo, num_heads):
    # Pure-JAX reference mirroring the PyTorch module exactly.
    B, S, D = x.shape
    E = wo.shape[0]
    hd = E // num_heads
    qkv = x @ wqkv.T + bqkv                                    # (B, S, 3E)
    qkv = qkv.reshape(B, S, num_heads, 3 * hd).transpose(0, 2, 1, 3)
    q, k, v = qkv[..., :hd], qkv[..., hd:2 * hd], qkv[..., 2 * hd:]
    logits = jnp.einsum("bhqd,bhkd->bhqk", q, k) / math.sqrt(hd)
    attn = jax.nn.softmax(logits, axis=-1)
    vals = jnp.einsum("bhqk,bhkd->bhqd", attn, v)
    vals = vals.transpose(0, 2, 1, 3).reshape(B, S, E)
    return vals @ wo.T + bo


if __name__ == "__main__":
    B, S = 2, 8
    input_dim, embed_dim, num_heads = 32, 32, 4

    key = jax.random.PRNGKey(0)
    kx, kqkv, ko = jax.random.split(key, 3)

    x = jax.random.normal(kx, (B, S, input_dim), dtype=jnp.float32)

    # Parameters (xavier-uniform weights, zero biases), PyTorch layout.
    wqkv = xavier_uniform(kqkv, 3 * embed_dim, input_dim)   # (3E, D)
    bqkv = jnp.zeros((3 * embed_dim,), jnp.float32)
    wo = xavier_uniform(ko, embed_dim, embed_dim)           # (E, E)
    bo = jnp.zeros((embed_dim,), jnp.float32)

    ref = reference_forward(x, wqkv, bqkv, wo, bo, num_heads)

    # f32 MXU operands (exact softmax reciprocal on this path).
    out_f32 = multihead_attention(x, wqkv, bqkv, wo, bo, num_heads=num_heads,
                                  compute_dtype=jnp.float32)
    out_f32 = jax.block_until_ready(out_f32)
    np.testing.assert_allclose(np.asarray(out_f32), np.asarray(ref),
                               rtol=5e-3, atol=5e-3)

    # bf16 MXU operands with f32 accumulation (default fast path).
    out_bf16 = multihead_attention(x, wqkv, bqkv, wo, bo, num_heads=num_heads,
                                   compute_dtype=jnp.bfloat16)
    out_bf16 = jax.block_until_ready(out_bf16)
    np.testing.assert_allclose(np.asarray(out_bf16), np.asarray(ref),
                               rtol=5e-2, atol=5e-2)

    print("KERNEL_OK")
</pallas_src>

<mosaic_0001>
module attributes {stable_mosaic.version = 11 : i64} {
  func.func @mha_kernel(%arg0: i32, %arg1: i32, %arg2: memref<1x8x32xf32, #tpu.memory_space<vmem>>, %arg3: memref<32x32xf32, #tpu.memory_space<vmem>>, %arg4: memref<32x32xf32, #tpu.memory_space<vmem>>, %arg5: memref<32x32xf32, #tpu.memory_space<vmem>>, %arg6: memref<1x32xf32, #tpu.memory_space<vmem>>, %arg7: memref<1x32xf32, #tpu.memory_space<vmem>>, %arg8: memref<1x32xf32, #tpu.memory_space<vmem>>, %arg9: memref<32x128xf32, #tpu.memory_space<vmem>>, %arg10: memref<1x128xf32, #tpu.memory_space<vmem>>, %arg11: memref<1x8x128xf32, #tpu.memory_space<vmem>>, %arg12: memref<8x32xf32, #tpu.memory_space<vmem>>, %arg13: memref<8x32xf32, #tpu.memory_space<vmem>>) attributes {dimension_semantics = [#tpu.dimension_semantics<parallel>, #tpu.dimension_semantics<arbitrary>], iteration_bounds = array<i64: 2, 1>, scalar_prefetch = 0 : i64, scratch_operands = 2 : i64, tpu.core_type = #tpu.core_type<tc>, window_params = [{transform_indices = @transform_0, window_bounds = array<i64: 1, 8, 32>}, {pipeline_mode = #tpu.pipeline_mode<synchronous>, transform_indices = @transform_1, window_bounds = array<i64: 32, 32>}, {pipeline_mode = #tpu.pipeline_mode<synchronous>, transform_indices = @transform_2, window_bounds = array<i64: 32, 32>}, {pipeline_mode = #tpu.pipeline_mode<synchronous>, transform_indices = @transform_3, window_bounds = array<i64: 32, 32>}, {pipeline_mode = #tpu.pipeline_mode<synchronous>, transform_indices = @transform_4, window_bounds = array<i64: 1, 32>}, {pipeline_mode = #tpu.pipeline_mode<synchronous>, transform_indices = @transform_5, window_bounds = array<i64: 1, 32>}, {pipeline_mode = #tpu.pipeline_mode<synchronous>, transform_indices = @transform_6, window_bounds = array<i64: 1, 32>}, {pipeline_mode = #tpu.pipeline_mode<synchronous>, transform_indices = @transform_7, window_bounds = array<i64: 32, 128>}, {pipeline_mode = #tpu.pipeline_mode<synchronous>, transform_indices = @transform_8, window_bounds = array<i64: 1, 128>}, {transform_indices = @transform_9, window_bounds = array<i64: 1, 8, 128>}]} {
    %c0_i32 = arith.constant 0 : i32
    %0 = arith.cmpi eq, %arg1, %c0_i32 : i32
    %1 = arith.extui %0 : i1 to i32
    %c0_i32_0 = arith.constant 0 : i32
    %2 = arith.cmpi ne, %1, %c0_i32_0 : i32
    scf.if %2 {
      %c0_54 = arith.constant 0 : index
      %c0_55 = arith.constant 0 : index
      %c0_56 = arith.constant 0 : index
      %93 = vector.load %arg2[%c0_54, %c0_55, %c0_56] : memref<1x8x32xf32, #tpu.memory_space<vmem>>, vector<1x8x32xf32>
      %94 = vector.shape_cast %93 : vector<1x8x32xf32> to vector<8x32xf32>
      %c0_57 = arith.constant 0 : index
      %c0_58 = arith.constant 0 : index
      %95 = vector.load %arg4[%c0_57, %c0_58] : memref<32x32xf32, #tpu.memory_space<vmem>>, vector<32x32xf32>
      %cst_59 = arith.constant dense<0.000000e+00> : vector<8x32xf32>
      %96 = tpu.matmul %94, %95, %cst_59 {dimension_numbers = #tpu.dot_dimension_numbers<[1], [0], [0], [1], [0, 0, 1, 1], [], []>} : vector<8x32xf32>, vector<32x32xf32>, vector<8x32xf32> -> vector<8x32xf32>
      %c0_60 = arith.constant 0 : index
      %c0_61 = arith.constant 0 : index
      %97 = vector.load %arg7[%c0_60, %c0_61] : memref<1x32xf32, #tpu.memory_space<vmem>>, vector<1x32xf32>
      %98 = vector.shape_cast %97 : vector<1x32xf32> to vector<32xf32>
      %99 = vector.shape_cast %98 : vector<32xf32> to vector<1x32xf32>
      %100 = vector.broadcast %99 : vector<1x32xf32> to vector<8x32xf32>
      %101 = arith.addf %96, %100 : vector<8x32xf32>
      %c0_62 = arith.constant 0 : index
      %c0_63 = arith.constant 0 : index
      %102 = vector.load %arg12[%c0_62, %c0_63] : memref<8x32xf32, #tpu.memory_space<vmem>>, vector<8x32xf32>
      tpu.vector_store %arg12[%c0_62, %c0_63], %101 {strides = array<i32>} : memref<8x32xf32, #tpu.memory_space<vmem>>, vector<8x32xf32>,
      %c0_64 = arith.constant 0 : index
      %c0_65 = arith.constant 0 : index
      %103 = vector.load %arg5[%c0_64, %c0_65] : memref<32x32xf32, #tpu.memory_space<vmem>>, vector<32x32xf32>
      %cst_66 = arith.constant dense<0.000000e+00> : vector<8x32xf32>
      %104 = tpu.matmul %94, %103, %cst_66 {dimension_numbers = #tpu.dot_dimension_numbers<[1], [0], [0], [1], [0, 0, 1, 1], [], []>} : vector<8x32xf32>, vector<32x32xf32>, vector<8x32xf32> -> vector<8x32xf32>
      %c0_67 = arith.constant 0 : index
      %c0_68 = arith.constant 0 : index
      %105 = vector.load %arg8[%c0_67, %c0_68] : memref<1x32xf32, #tpu.memory_space<vmem>>, vector<1x32xf32>
      %106 = vector.shape_cast %105 : vector<1x32xf32> to vector<32xf32>
      %107 = vector.shape_cast %106 : vector<32xf32> to vector<1x32xf32>
      %108 = vector.broadcast %107 : vector<1x32xf32> to vector<8x32xf32>
      %109 = arith.addf %104, %108 : vector<8x32xf32>
      %c0_69 = arith.constant 0 : index
      %c0_70 = arith.constant 0 : index
      %110 = vector.load %arg13[%c0_69, %c0_70] : memref<8x32xf32, #tpu.memory_space<vmem>>, vector<8x32xf32>
      tpu.vector_store %arg13[%c0_69, %c0_70], %109 {strides = array<i32>} : memref<8x32xf32, #tpu.memory_space<vmem>>, vector<8x32xf32>,
    } else {
    }
    %c0 = arith.constant 0 : index
    %c0_1 = arith.constant 0 : index
    %c0_2 = arith.constant 0 : index
    %3 = vector.load %arg2[%c0, %c0_1, %c0_2] : memref<1x8x32xf32, #tpu.memory_space<vmem>>, vector<1x8x32xf32>
    %4 = vector.shape_cast %3 : vector<1x8x32xf32> to vector<8x32xf32>
    %c0_3 = arith.constant 0 : index
    %c0_4 = arith.constant 0 : index
    %5 = vector.load %arg3[%c0_3, %c0_4] : memref<32x32xf32, #tpu.memory_space<vmem>>, vector<32x32xf32>
    %cst = arith.constant dense<0.000000e+00> : vector<8x32xf32>
    %6 = tpu.matmul %4, %5, %cst {dimension_numbers = #tpu.dot_dimension_numbers<[1], [0], [0], [1], [0, 0, 1, 1], [], []>} : vector<8x32xf32>, vector<32x32xf32>, vector<8x32xf32> -> vector<8x32xf32>
    %c0_5 = arith.constant 0 : index
    %c0_6 = arith.constant 0 : index
    %7 = vector.load %arg6[%c0_5, %c0_6] : memref<1x32xf32, #tpu.memory_space<vmem>>, vector<1x32xf32>
    %8 = vector.shape_cast %7 : vector<1x32xf32> to vector<32xf32>
    %9 = vector.shape_cast %8 : vector<32xf32> to vector<1x32xf32>
    %10 = vector.broadcast %9 : vector<1x32xf32> to vector<8x32xf32>
    %11 = arith.addf %6, %10 : vector<8x32xf32>
    %cst_7 = arith.constant 0.000000e+00 : f32
    %12 = vector.broadcast %cst_7 : f32 to vector<8x128xf32>
    %13 = vector.extract_strided_slice %11 {offsets = [0, 0], sizes = [8, 8], strides = [1, 1]} : vector<8x32xf32> to vector<8x8xf32>
    %c0_8 = arith.constant 0 : index
    %c0_9 = arith.constant 0 : index
    %14 = vector.load %arg12[%c0_8, %c0_9] : memref<8x32xf32, #tpu.memory_space<vmem>>, vector<8x8xf32>
    %cst_10 = arith.constant dense<0.000000e+00> : vector<8x8xf32>
    %15 = tpu.matmul %13, %14, %cst_10 {dimension_numbers = #tpu.dot_dimension_numbers<[1], [1], [0], [0], [0, 0, 1, 0], [], []>} : vector<8x8xf32>, vector<8x8xf32>, vector<8x8xf32> -> vector<8x8xf32>
    %cst_11 = arith.constant dense<0xFF800000> : vector<8xf32>
    %16 = vector.multi_reduction <maximumf>, %15, %cst_11 [1] : vector<8x8xf32> to vector<8xf32>
    %17 = vector.shape_cast %16 : vector<8xf32> to vector<8x1xf32>
    %18 = vector.broadcast %17 : vector<8x1xf32> to vector<8x8xf32>
    %19 = arith.subf %15, %18 : vector<8x8xf32>
    %20 = math.exp %19 : vector<8x8xf32>
    %cst_12 = arith.constant dense<0.000000e+00> : vector<8xf32>
    %21 = vector.multi_reduction <add>, %20, %cst_12 [1] : vector<8x8xf32> to vector<8xf32>
    %22 = vector.shape_cast %21 : vector<8xf32> to vector<8x1xf32>
    %23 = tpu.reciprocal %22 : vector<8x1xf32> -> vector<8x1xf32>
    %24 = vector.broadcast %23 : vector<8x1xf32> to vector<8x8xf32>
    %25 = arith.mulf %20, %24 : vector<8x8xf32>
    %c0_13 = arith.constant 0 : index
    %c0_14 = arith.constant 0 : index
    %26 = vector.load %arg13[%c0_13, %c0_14] : memref<8x32xf32, #tpu.memory_space<vmem>>, vector<8x8xf32>
    %cst_15 = arith.constant dense<0.000000e+00> : vector<8x8xf32>
    %27 = tpu.matmul %25, %26, %cst_15 {dimension_numbers = #tpu.dot_dimension_numbers<[1], [0], [0], [1], [0, 0, 1, 1], [], []>} : vector<8x8xf32>, vector<8x8xf32>, vector<8x8xf32> -> vector<8x8xf32>
    %c0_16 = arith.constant 0 : index
    %c0_17 = arith.constant 0 : index
    %28 = vector.load %arg9[%c0_16, %c0_17] : memref<32x128xf32, #tpu.memory_space<vmem>>, vector<8x128xf32>
    %cst_18 = arith.constant dense<0.000000e+00> : vector<8x128xf32>
    %29 = tpu.matmul %27, %28, %cst_18 {dimension_numbers = #tpu.dot_dimension_numbers<[1], [0], [0], [1], [0, 0, 1, 1], [], []>} : vector<8x8xf32>, vector<8x128xf32>, vector<8x128xf32> -> vector<8x128xf32>
    %30 = arith.addf %12, %29 : vector<8x128xf32>
    %31 = vector.extract_strided_slice %11 {offsets = [0, 8], sizes = [8, 8], strides = [1, 1]} : vector<8x32xf32> to vector<8x8xf32>
    %c0_19 = arith.constant 0 : index
    %c8 = arith.constant 8 : index
    %32 = vector.load %arg12[%c0_19, %c8] : memref<8x32xf32, #tpu.memory_space<vmem>>, vector<8x8xf32>
    %cst_20 = arith.constant dense<0.000000e+00> : vector<8x8xf32>
    %33 = tpu.matmul %31, %32, %cst_20 {dimension_numbers = #tpu.dot_dimension_numbers<[1], [1], [0], [0], [0, 0, 1, 0], [], []>} : vector<8x8xf32>, vector<8x8xf32>, vector<8x8xf32> -> vector<8x8xf32>
    %cst_21 = arith.constant dense<0xFF800000> : vector<8xf32>
    %34 = vector.multi_reduction <maximumf>, %33, %cst_21 [1] : vector<8x8xf32> to vector<8xf32>
    %35 = vector.shape_cast %34 : vector<8xf32> to vector<8x1xf32>
    %36 = vector.broadcast %35 : vector<8x1xf32> to vector<8x8xf32>
    %37 = arith.subf %33, %36 : vector<8x8xf32>
    %38 = math.exp %37 : vector<8x8xf32>
    %cst_22 = arith.constant dense<0.000000e+00> : vector<8xf32>
    %39 = vector.multi_reduction <add>, %38, %cst_22 [1] : vector<8x8xf32> to vector<8xf32>
    %40 = vector.shape_cast %39 : vector<8xf32> to vector<8x1xf32>
    %41 = tpu.reciprocal %40 : vector<8x1xf32> -> vector<8x1xf32>
    %42 = vector.broadcast %41 : vector<8x1xf32> to vector<8x8xf32>
    %43 = arith.mulf %38, %42 : vector<8x8xf32>
    %c0_23 = arith.constant 0 : index
    %c8_24 = arith.constant 8 : index
    %44 = vector.load %arg13[%c0_23, %c8_24] : memref<8x32xf32, #tpu.memory_space<vmem>>, vector<8x8xf32>
    %cst_25 = arith.constant dense<0.000000e+00> : vector<8x8xf32>
    %45 = tpu.matmul %43, %44, %cst_25 {dimension_numbers = #tpu.dot_dimension_numbers<[1], [0], [0], [1], [0, 0, 1, 1], [], []>} : vector<8x8xf32>, vector<8x8xf32>, vector<8x8xf32> -> vector<8x8xf32>
    %c8_26 = arith.constant 8 : index
    %c0_27 = arith.constant 0 : index
    %46 = vector.load %arg9[%c8_26, %c0_27] : memref<32x128xf32, #tpu.memory_space<vmem>>, vector<8x128xf32>
    %cst_28 = arith.constant dense<0.000000e+00> : vector<8x128xf32>
    %47 = tpu.matmul %45, %46, %cst_28 {dimension_numbers = #tpu.dot_dimension_numbers<[1], [0], [0], [1], [0, 0, 1, 1], [], []>} : vector<8x8xf32>, vector<8x128xf32>, vector<8x128xf32> -> vector<8x128xf32>
    %48 = arith.addf %30, %47 : vector<8x128xf32>
    %49 = vector.extract_strided_slice %11 {offsets = [0, 16], sizes = [8, 8], strides = [1, 1]} : vector<8x32xf32> to vector<8x8xf32>
    %c0_29 = arith.constant 0 : index
    %c16 = arith.constant 16 : index
    %50 = vector.load %arg12[%c0_29, %c16] : memref<8x32xf32, #tpu.memory_space<vmem>>, vector<8x8xf32>
    %cst_30 = arith.constant dense<0.000000e+00> : vector<8x8xf32>
    %51 = tpu.matmul %49, %50, %cst_30 {dimension_numbers = #tpu.dot_dimension_numbers<[1], [1], [0], [0], [0, 0, 1, 0], [], []>} : vector<8x8xf32>, vector<8x8xf32>, vector<8x8xf32> -> vector<8x8xf32>
    %cst_31 = arith.constant dense<0xFF800000> : vector<8xf32>
    %52 = vector.multi_reduction <maximumf>, %51, %cst_31 [1] : vector<8x8xf32> to vector<8xf32>
    %53 = vector.shape_cast %52 : vector<8xf32> to vector<8x1xf32>
    %54 = vector.broadcast %53 : vector<8x1xf32> to vector<8x8xf32>
    %55 = arith.subf %51, %54 : vector<8x8xf32>
    %56 = math.exp %55 : vector<8x8xf32>
    %cst_32 = arith.constant dense<0.000000e+00> : vector<8xf32>
    %57 = vector.multi_reduction <add>, %56, %cst_32 [1] : vector<8x8xf32> to vector<8xf32>
    %58 = vector.shape_cast %57 : vector<8xf32> to vector<8x1xf32>
    %59 = tpu.reciprocal %58 : vector<8x1xf32> -> vector<8x1xf32>
    %60 = vector.broadcast %59 : vector<8x1xf32> to vector<8x8xf32>
    %61 = arith.mulf %56, %60 : vector<8x8xf32>
    %c0_33 = arith.constant 0 : index
    %c16_34 = arith.constant 16 : index
    %62 = vector.load %arg13[%c0_33, %c16_34] : memref<8x32xf32, #tpu.memory_space<vmem>>, vector<8x8xf32>
    %cst_35 = arith.constant dense<0.000000e+00> : vector<8x8xf32>
    %63 = tpu.matmul %61, %62, %cst_35 {dimension_numbers = #tpu.dot_dimension_numbers<[1], [0], [0], [1], [0, 0, 1, 1], [], []>} : vector<8x8xf32>, vector<8x8xf32>, vector<8x8xf32> -> vector<8x8xf32>
    %c16_36 = arith.constant 16 : index
    %c0_37 = arith.constant 0 : index
    %64 = vector.load %arg9[%c16_36, %c0_37] : memref<32x128xf32, #tpu.memory_space<vmem>>, vector<8x128xf32>
    %cst_38 = arith.constant dense<0.000000e+00> : vector<8x128xf32>
    %65 = tpu.matmul %63, %64, %cst_38 {dimension_numbers = #tpu.dot_dimension_numbers<[1], [0], [0], [1], [0, 0, 1, 1], [], []>} : vector<8x8xf32>, vector<8x128xf32>, vector<8x128xf32> -> vector<8x128xf32>
    %66 = arith.addf %48, %65 : vector<8x128xf32>
    %67 = vector.extract_strided_slice %11 {offsets = [0, 24], sizes = [8, 8], strides = [1, 1]} : vector<8x32xf32> to vector<8x8xf32>
    %c0_39 = arith.constant 0 : index
    %c24 = arith.constant 24 : index
    %68 = vector.load %arg12[%c0_39, %c24] : memref<8x32xf32, #tpu.memory_space<vmem>>, vector<8x8xf32>
    %cst_40 = arith.constant dense<0.000000e+00> : vector<8x8xf32>
    %69 = tpu.matmul %67, %68, %cst_40 {dimension_numbers = #tpu.dot_dimension_numbers<[1], [1], [0], [0], [0, 0, 1, 0], [], []>} : vector<8x8xf32>, vector<8x8xf32>, vector<8x8xf32> -> vector<8x8xf32>
    %cst_41 = arith.constant dense<0xFF800000> : vector<8xf32>
    %70 = vector.multi_reduction <maximumf>, %69, %cst_41 [1] : vector<8x8xf32> to vector<8xf32>
    %71 = vector.shape_cast %70 : vector<8xf32> to vector<8x1xf32>
    %72 = vector.broadcast %71 : vector<8x1xf32> to vector<8x8xf32>
    %73 = arith.subf %69, %72 : vector<8x8xf32>
    %74 = math.exp %73 : vector<8x8xf32>
    %cst_42 = arith.constant dense<0.000000e+00> : vector<8xf32>
    %75 = vector.multi_reduction <add>, %74, %cst_42 [1] : vector<8x8xf32> to vector<8xf32>
    %76 = vector.shape_cast %75 : vector<8xf32> to vector<8x1xf32>
    %77 = tpu.reciprocal %76 : vector<8x1xf32> -> vector<8x1xf32>
    %78 = vector.broadcast %77 : vector<8x1xf32> to vector<8x8xf32>
    %79 = arith.mulf %74, %78 : vector<8x8xf32>
    %c0_43 = arith.constant 0 : index
    %c24_44 = arith.constant 24 : index
    %80 = vector.load %arg13[%c0_43, %c24_44] : memref<8x32xf32, #tpu.memory_space<vmem>>, vector<8x8xf32>
    %cst_45 = arith.constant dense<0.000000e+00> : vector<8x8xf32>
    %81 = tpu.matmul %79, %80, %cst_45 {dimension_numbers = #tpu.dot_dimension_numbers<[1], [0], [0], [1], [0, 0, 1, 1], [], []>} : vector<8x8xf32>, vector<8x8xf32>, vector<8x8xf32> -> vector<8x8xf32>
    %c24_46 = arith.constant 24 : index
    %c0_47 = arith.constant 0 : index
    %82 = vector.load %arg9[%c24_46, %c0_47] : memref<32x128xf32, #tpu.memory_space<vmem>>, vector<8x128xf32>
    %cst_48 = arith.constant dense<0.000000e+00> : vector<8x128xf32>
    %83 = tpu.matmul %81, %82, %cst_48 {dimension_numbers = #tpu.dot_dimension_numbers<[1], [0], [0], [1], [0, 0, 1, 1], [], []>} : vector<8x8xf32>, vector<8x128xf32>, vector<8x128xf32> -> vector<8x128xf32>
    %84 = arith.addf %66, %83 : vector<8x128xf32>
    %c0_49 = arith.constant 0 : index
    %c0_50 = arith.constant 0 : index
    %85 = vector.load %arg10[%c0_49, %c0_50] : memref<1x128xf32, #tpu.memory_space<vmem>>, vector<1x128xf32>
    %86 = vector.shape_cast %85 : vector<1x128xf32> to vector<128xf32>
    %87 = vector.shape_cast %86 : vector<128xf32> to vector<1x128xf32>
    %88 = vector.broadcast %87 : vector<1x128xf32> to vector<8x128xf32>
    %89 = arith.addf %84, %88 : vector<8x128xf32>
    %c0_51 = arith.constant 0 : index
    %c0_52 = arith.constant 0 : index
    %c0_53 = arith.constant 0 : index
    %90 = vector.load %arg11[%c0_51, %c0_52, %c0_53] : memref<1x8x128xf32, #tpu.memory_space<vmem>>, vector<1x8x128xf32>
    %91 = vector.shape_cast %90 : vector<1x8x128xf32> to vector<8x128xf32>
    %92 = vector.shape_cast %89 : vector<8x128xf32> to vector<1x8x128xf32>
    tpu.vector_store %arg11[%c0_51, %c0_52, %c0_53], %92 {strides = array<i32>} : memref<1x8x128xf32, #tpu.memory_space<vmem>>, vector<1x8x128xf32>,
    return
  }
  func.func @transform_0(%arg0: i32, %arg1: i32) -> (i32, i32, i32) {
    %c0_i32 = arith.constant 0 : i32
    %c0_i32_0 = arith.constant 0 : i32
    %c0_i32_1 = arith.constant 0 : i32
    return %arg0, %c0_i32, %c0_i32_0 : i32, i32, i32
  }
  func.func @transform_1(%arg0: i32, %arg1: i32) -> (i32, i32) {
    %c0_i32 = arith.constant 0 : i32
    %c0_i32_0 = arith.constant 0 : i32
    %c0_i32_1 = arith.constant 0 : i32
    return %c0_i32, %c0_i32_0 : i32, i32
  }
  func.func @transform_2(%arg0: i32, %arg1: i32) -> (i32, i32) {
    %c0_i32 = arith.constant 0 : i32
    %c0_i32_0 = arith.constant 0 : i32
    %c0_i32_1 = arith.constant 0 : i32
    return %c0_i32, %c0_i32_0 : i32, i32
  }
  func.func @transform_3(%arg0: i32, %arg1: i32) -> (i32, i32) {
    %c0_i32 = arith.constant 0 : i32
    %c0_i32_0 = arith.constant 0 : i32
    %c0_i32_1 = arith.constant 0 : i32
    return %c0_i32, %c0_i32_0 : i32, i32
  }
  func.func @transform_4(%arg0: i32, %arg1: i32) -> (i32, i32) {
    %c0_i32 = arith.constant 0 : i32
    %c0_i32_0 = arith.constant 0 : i32
    %c0_i32_1 = arith.constant 0 : i32
    return %c0_i32, %c0_i32_0 : i32, i32
  }
  func.func @transform_5(%arg0: i32, %arg1: i32) -> (i32, i32) {
    %c0_i32 = arith.constant 0 : i32
    %c0_i32_0 = arith.constant 0 : i32
    %c0_i32_1 = arith.constant 0 : i32
    return %c0_i32, %c0_i32_0 : i32, i32
  }
  func.func @transform_6(%arg0: i32, %arg1: i32) -> (i32, i32) {
    %c0_i32 = arith.constant 0 : i32
    %c0_i32_0 = arith.constant 0 : i32
    %c0_i32_1 = arith.constant 0 : i32
    return %c0_i32, %c0_i32_0 : i32, i32
  }
  func.func @transform_7(%arg0: i32, %arg1: i32) -> (i32, i32) {
    %c0_i32 = arith.constant 0 : i32
    %c0_i32_0 = arith.constant 0 : i32
    %c0_i32_1 = arith.constant 0 : i32
    return %c0_i32, %c0_i32_0 : i32, i32
  }
  func.func @transform_8(%arg0: i32, %arg1: i32) -> (i32, i32) {
    %c0_i32 = arith.constant 0 : i32
    %c0_i32_0 = arith.constant 0 : i32
    %c0_i32_1 = arith.constant 0 : i32
    return %c0_i32, %c0_i32_0 : i32, i32
  }
  func.func @transform_9(%arg0: i32, %arg1: i32) -> (i32, i32, i32) {
    %c0_i32 = arith.constant 0 : i32
    %c0_i32_0 = arith.constant 0 : i32
    return %arg0, %arg1, %c0_i32 : i32, i32, i32
  }
}

</mosaic_0001>

<llo_original>
// kernel: tpu_custom_call.1
$region0: #{tpu_custom_call.1}
  #allocation0 [shape = 'u32[]', space=smem, size = 0x4, offset = 0x4, fixed_abs, tag = 'smem constant byte address 0x4 - core index']
  #allocation1 [shape = 'u32[144,128]{1,0:T(1,128)}', space=vmem, size = 0x12000, scoped, tag = 'internal scratch']
  #allocation2 [shape = 'f32[8,32]{1,0:T(8,128)}', space=vmem, size = 0x1000, scoped, tag = 'scratch operand']
  #allocation3 [shape = 'f32[8,32]{1,0:T(8,128)}', space=vmem, size = 0x1000, scoped, tag = 'scratch operand']
  %s0 = inlined_call_operand.hbm [shape: f32[2,8,32], index: 0, kind: input, shape index: {}]
  %s1 = inlined_call_operand.hbm [shape: f32[32,32], index: 1, kind: input, shape index: {}]
  %s2 = inlined_call_operand.hbm [shape: f32[32,32], index: 2, kind: input, shape index: {}]
  %s3 = inlined_call_operand.hbm [shape: f32[32,32], index: 3, kind: input, shape index: {}]
  %s4 = inlined_call_operand.vmem [shape: f32[1,32], index: 4, kind: input, shape index: {}]
  %s5 = inlined_call_operand.vmem [shape: f32[1,32], index: 5, kind: input, shape index: {}]
  %s6 = inlined_call_operand.vmem [shape: f32[1,32], index: 6, kind: input, shape index: {}]
  %s7 = inlined_call_operand.hbm [shape: f32[32,128], index: 7, kind: input, shape index: {}]
  %s8 = inlined_call_operand.vmem [shape: f32[1,128], index: 8, kind: input, shape index: {}]
  %s9 = inlined_call_operand.hbm [shape: f32[2,8,128], index: 9, kind: output, shape index: {}]
  %s10 = sld [smem:[#allocation0]]
  $region93: #{tpu_custom_call.1} parent=0
    _
  %s12 = ssub.s32 1, %s10
  %s13 = scalar_select 0, %s12, %s10
  $region1: #{tpu_custom_call.1} parent=0
    #allocation4 [shape = 'u8[8192]{0}', space=vmem, size = 0x2000, scoped, tag = 'input window, operand 0']
    #allocation5 [shape = 's32[2]{0}', space=sflag, size = 0x8, scoped, tag = 'scoped memory for tpu_custom_call.1']
    #allocation6 [shape = 's32[2]{0}', space=sflag, size = 0x8, scoped, tag = 'scoped memory for tpu_custom_call.1']
    #allocation7 [shape = 'u8[16384]{0}', space=vmem, size = 0x4000, scoped, tag = 'input window, operand 1, single buffered']
    #allocation8 [shape = 's32[1]{0}', space=sflag, size = 0x4, scoped, tag = 'scoped memory for tpu_custom_call.1']
    #allocation9 [shape = 'u8[16384]{0}', space=vmem, size = 0x4000, scoped, tag = 'input window, operand 2, single buffered']
    #allocation10 [shape = 'u8[16384]{0}', space=vmem, size = 0x4000, scoped, tag = 'input window, operand 3, single buffered']
    #allocation11 [shape = 's32[1]{0}', space=sflag, size = 0x4, scoped, tag = 'scoped memory for tpu_custom_call.1']
    #allocation12 [shape = 'u8[16384]{0}', space=vmem, size = 0x4000, scoped, tag = 'input window, operand 7, single buffered']
    #allocation13 [shape = 'u8[8192]{0}', space=vmem, size = 0x2000, scoped, tag = 'output window, operand 0']
    %14 = vsyncpa [#allocation5], 0
    %s15 = scalar_lea.sflag [#allocation5], 1
    %16 = vsyncpa %s15, 0
    %17 = vsyncpa [#allocation8], 0
    %18 = vsyncpa [#allocation11], 0
    %19 = vsyncpa [#allocation6], 0
    %s20 = scalar_lea.sflag [#allocation6], 1
    %21 = vsyncpa %s20, 0
    loop: start=0, step=1, limit=4
    $region2: #{tpu_custom_call.1} parent=1 // loop_pre_header
      _
    $region3: #{tpu_custom_call.1} parent=1 // loop_header
      %s23 = sphi 0, %s27
      %p24 = scmp.ge.s32.totalorder %s23, 4
      %s30 = sphi 0, %s42
      %s31 = sphi 0, %s38
      %s32 = sphi 0, %s30
      %s33 = sphi 0, %s31
      %s34 = sphi 0, %s32
      %s35 = sphi 0, %s33
      %s45 = sphi 0, %s47
      %s48 = sphi 0, %s45
      %s49 = sphi 0, %s48
      %s65 = sphi 0, %s49
      %s69 = sphi 0, %s69
      %s71 = sphi 0, %s69
      %s72 = sphi 0, %s71
      %s86 = sphi 0, %s72
      %s90 = sphi 0, %s90
      %s92 = sphi 0, %s90
      %s93 = sphi 0, %s92
      %s107 = sphi 0, %s93
      %s111 = sphi 0, %s111
      %s113 = sphi 0, %s111
      %s114 = sphi 0, %s113
      %s128 = sphi 0, %s114
      %s132 = sphi 0, %s132
      %s134 = sphi 0, %s132
      %s135 = sphi 0, %s134
      %s149 = sphi 0, %s135
      %s153 = sphi 0, %s153
      %s155 = sphi 0, %s153
      %s156 = sphi 0, %s155
      %s170 = sphi 0, %s156
      %s174 = sphi 0, %s174
      %s176 = sphi 0, %s174
      %s177 = sphi 0, %s176
      %s191 = sphi 0, %s177
      %s195 = sphi 0, %s195
      %s197 = sphi 0, %s195
      %s198 = sphi 0, %s197
      %s212 = sphi 0, %s198
      %s216 = sphi 0, %s216
      %s218 = sphi 0, %s216
      %s219 = sphi 0, %s218
      %s233 = sphi 0, %s219
      %s241 = sphi 0, %s243
      %s244 = sphi 0, %s241
      %s245 = sphi 0, %s244
      %s261 = sphi 0, %s245
    $region4: #{tpu_custom_call.1} parent=1 // loop_header_branch
      %26 = sbr.rel (%p24) target = $region8
    $region5: #{tpu_custom_call.1} parent=1 // loop_body
      %s28 = ssub.s32 %s23, 1
      %s29 = ssub.s32 %s23, 2
      %s36 = sadd.s32 1, %s31
      %p37 = scmp.ge.s32.totalorder %s36, 1
      %s38 = scalar_select %p37, 0, %s36
      %s39 = sadd.s32 1, %s30
      %s40 = scalar_select %p37, %s39, %s30
      %p41 = scmp.ge.s32.totalorder %s40, 2
      %s42 = scalar_select %p41, 0, %s40
      %s43 = ssub.s32 %s30, %s42
      %p44 = scmp.eq.s32.totalorder %s43, 0
      %s46 = sadd.s32 %s45, 1
      %s47 = scalar_select %p44, %s45, %s46
      %p50 = pneg %p44
      %p51 = scmp.eq.s32.totalorder %s23, 1
      %p52 = por %p50, %p51
      %p53 = scmp.ne.s32.totalorder %s45, %s48
      %p54 = scmp.eq.s32.totalorder %s23, 0
      %p55 = por %p53, %p54
      %p56 = scmp.ne.s32.totalorder %s45, %s48
      %p57 = scmp.eq.s32.totalorder %s28, 1
      %p58 = por %p56, %p57
      %p59 = scmp.ne.s32.totalorder %s48, %s49
      %p60 = scmp.eq.s32.totalorder %s28, 0
      %p61 = por %p59, %p60
      %p62 = scmp.ne.s32.totalorder %s48, %s49
      %p63 = scmp.eq.s32.totalorder %s29, 1
      %p64 = por %p62, %p63
      %p66 = scmp.ne.s32.totalorder %s49, %s65
      %p67 = scmp.eq.s32.totalorder %s29, 0
      %p68 = por %p66, %p67
      %s70 = sadd.s32 %s69, 1
      %p73 = scmp.eq.s32.totalorder %s23, 1
      %p74 = scmp.ne.s32.totalorder %s69, %s71
      %p75 = scmp.eq.s32.totalorder %s23, 0
      %p76 = por %p74, %p75
      %p77 = scmp.ne.s32.totalorder %s69, %s71
      %p78 = scmp.eq.s32.totalorder %s28, 1
      %p79 = por %p77, %p78
      %p80 = scmp.ne.s32.totalorder %s71, %s72
      %p81 = scmp.eq.s32.totalorder %s28, 0
      %p82 = por %p80, %p81
      %p83 = scmp.ne.s32.totalorder %s71, %s72
      %p84 = scmp.eq.s32.totalorder %s29, 1
      %p85 = por %p83, %p84
      %p87 = scmp.ne.s32.totalorder %s72, %s86
      %p88 = scmp.eq.s32.totalorder %s29, 0
      %p89 = por %p87, %p88
      %s91 = sadd.s32 %s90, 1
      %p94 = scmp.eq.s32.totalorder %s23, 1
      %p95 = scmp.ne.s32.totalorder %s90, %s92
      %p96 = scmp.eq.s32.totalorder %s23, 0
      %p97 = por %p95, %p96
      %p98 = scmp.ne.s32.totalorder %s90, %s92
      %p99 = scmp.eq.s32.totalorder %s28, 1
      %p100 = por %p98, %p99
      %p101 = scmp.ne.s32.totalorder %s92, %s93
      %p102 = scmp.eq.s32.totalorder %s28, 0
      %p103 = por %p101, %p102
      %p104 = scmp.ne.s32.totalorder %s92, %s93
      %p105 = scmp.eq.s32.totalorder %s29, 1
      %p106 = por %p104, %p105
      %p108 = scmp.ne.s32.totalorder %s93, %s107
      %p109 = scmp.eq.s32.totalorder %s29, 0
      %p110 = por %p108, %p109
      %s112 = sadd.s32 %s111, 1
      %p115 = scmp.eq.s32.totalorder %s23, 1
      %p116 = scmp.ne.s32.totalorder %s111, %s113
      %p117 = scmp.eq.s32.totalorder %s23, 0
      %p118 = por %p116, %p117
      %p119 = scmp.ne.s32.totalorder %s111, %s113
      %p120 = scmp.eq.s32.totalorder %s28, 1
      %p121 = por %p119, %p120
      %p122 = scmp.ne.s32.totalorder %s113, %s114
      %p123 = scmp.eq.s32.totalorder %s28, 0
      %p124 = por %p122, %p123
      %p125 = scmp.ne.s32.totalorder %s113, %s114
      %p126 = scmp.eq.s32.totalorder %s29, 1
      %p127 = por %p125, %p126
      %p129 = scmp.ne.s32.totalorder %s114, %s128
      %p130 = scmp.eq.s32.totalorder %s29, 0
      %p131 = por %p129, %p130
      %s133 = sadd.s32 %s132, 1
      %p136 = scmp.eq.s32.totalorder %s23, 1
      %p137 = scmp.ne.s32.totalorder %s132, %s134
      %p138 = scmp.eq.s32.totalorder %s23, 0
      %p139 = por %p137, %p138
      %p140 = scmp.ne.s32.totalorder %s132, %s134
      %p141 = scmp.eq.s32.totalorder %s28, 1
      %p142 = por %p140, %p141
      %p143 = scmp.ne.s32.totalorder %s134, %s135
      %p144 = scmp.eq.s32.totalorder %s28, 0
      %p145 = por %p143, %p144
      %p146 = scmp.ne.s32.totalorder %s134, %s135
      %p147 = scmp.eq.s32.totalorder %s29, 1
      %p148 = por %p146, %p147
      %p150 = scmp.ne.s32.totalorder %s135, %s149
      %p151 = scmp.eq.s32.totalorder %s29, 0
      %p152 = por %p150, %p151
      %s154 = sadd.s32 %s153, 1
      %p157 = scmp.eq.s32.totalorder %s23, 1
      %p158 = scmp.ne.s32.totalorder %s153, %s155
      %p159 = scmp.eq.s32.totalorder %s23, 0
      %p160 = por %p158, %p159
      %p161 = scmp.ne.s32.totalorder %s153, %s155
      %p162 = scmp.eq.s32.totalorder %s28, 1
      %p163 = por %p161, %p162
      %p164 = scmp.ne.s32.totalorder %s155, %s156
      %p165 = scmp.eq.s32.totalorder %s28, 0
      %p166 = por %p164, %p165
      %p167 = scmp.ne.s32.totalorder %s155, %s156
      %p168 = scmp.eq.s32.totalorder %s29, 1
      %p169 = por %p167, %p168
      %p171 = scmp.ne.s32.totalorder %s156, %s170
      %p172 = scmp.eq.s32.totalorder %s29, 0
      %p173 = por %p171, %p172
      %s175 = sadd.s32 %s174, 1
      %p178 = scmp.eq.s32.totalorder %s23, 1
      %p179 = scmp.ne.s32.totalorder %s174, %s176
      %p180 = scmp.eq.s32.totalorder %s23, 0
      %p181 = por %p179, %p180
      %p182 = scmp.ne.s32.totalorder %s174, %s176
      %p183 = scmp.eq.s32.totalorder %s28, 1
      %p184 = por %p182, %p183
      %p185 = scmp.ne.s32.totalorder %s176, %s177
      %p186 = scmp.eq.s32.totalorder %s28, 0
      %p187 = por %p185, %p186
      %p188 = scmp.ne.s32.totalorder %s176, %s177
      %p189 = scmp.eq.s32.totalorder %s29, 1
      %p190 = por %p188, %p189
      %p192 = scmp.ne.s32.totalorder %s177, %s191
      %p193 = scmp.eq.s32.totalorder %s29, 0
      %p194 = por %p192, %p193
      %s196 = sadd.s32 %s195, 1
      %p199 = scmp.eq.s32.totalorder %s23, 1
      %p200 = scmp.ne.s32.totalorder %s195, %s197
      %p201 = scmp.eq.s32.totalorder %s23, 0
      %p202 = por %p200, %p201
      %p203 = scmp.ne.s32.totalorder %s195, %s197
      %p204 = scmp.eq.s32.totalorder %s28, 1
      %p205 = por %p203, %p204
      %p206 = scmp.ne.s32.totalorder %s197, %s198
      %p207 = scmp.eq.s32.totalorder %s28, 0
      %p208 = por %p206, %p207
      %p209 = scmp.ne.s32.totalorder %s197, %s198
      %p210 = scmp.eq.s32.totalorder %s29, 1
      %p211 = por %p209, %p210
      %p213 = scmp.ne.s32.totalorder %s198, %s212
      %p214 = scmp.eq.s32.totalorder %s29, 0
      %p215 = por %p213, %p214
      %s217 = sadd.s32 %s216, 1
      %p220 = scmp.eq.s32.totalorder %s23, 1
      %p221 = scmp.ne.s32.totalorder %s216, %s218
      %p222 = scmp.eq.s32.totalorder %s23, 0
      %p223 = por %p221, %p222
      %p224 = scmp.ne.s32.totalorder %s216, %s218
      %p225 = scmp.eq.s32.totalorder %s28, 1
      %p226 = por %p224, %p225
      %p227 = scmp.ne.s32.totalorder %s218, %s219
      %p228 = scmp.eq.s32.totalorder %s28, 0
      %p229 = por %p227, %p228
      %p230 = scmp.ne.s32.totalorder %s218, %s219
      %p231 = scmp.eq.s32.totalorder %s29, 1
      %p232 = por %p230, %p231
      %p234 = scmp.ne.s32.totalorder %s219, %s233
      %p235 = scmp.eq.s32.totalorder %s29, 0
      %p236 = por %p234, %p235
      %s237 = ssub.s32 %s30, %s42
      %s238 = ssub.s32 %s31, %s38
      %s239 = sor.u32 %s237, %s238
      %p240 = scmp.eq.s32.totalorder %s239, 0
      %s242 = sadd.s32 %s241, 1
      %s243 = scalar_select %p240, %s241, %s242
      %p246 = pneg %p240
      %p247 = scmp.eq.s32.totalorder %s23, 1
      %p248 = por %p246, %p247
      %p249 = scmp.ne.s32.totalorder %s241, %s244
      %p250 = scmp.eq.s32.totalorder %s23, 0
      %p251 = por %p249, %p250
      %p252 = scmp.ne.s32.totalorder %s241, %s244
      %p253 = scmp.eq.s32.totalorder %s28, 1
      %p254 = por %p252, %p253
      %p255 = scmp.ne.s32.totalorder %s244, %s245
      %p256 = scmp.eq.s32.totalorder %s28, 0
      %p257 = por %p255, %p256
      %p258 = scmp.ne.s32.totalorder %s244, %s245
      %p259 = scmp.eq.s32.totalorder %s29, 1
      %p260 = por %p258, %p259
      %p262 = scmp.ne.s32.totalorder %s245, %s261
      %p263 = scmp.eq.s32.totalorder %s29, 0
      %p264 = por %p262, %p263
      %p265 = scmp.le.s32.totalorder 1, %s23
      %p266 = scmp.lt.s32.totalorder %s23, 3
      %p267 = pnand %p265, %p266
      %p268 = pneg %p267
      // Predicated region
      $region9: #{tpu_custom_call.1} parent=5 // pred_check
        _
      $region10: #{tpu_custom_call.1} parent=5 // pred_check_branch
        %270 = sbr.rel (%p267) target = $region12
      $region11: #{tpu_custom_call.1} parent=5 // pred_region
        %s271 = ssub.s32 %s23, 1
        // Predicated region
        $region13: #{tpu_custom_call.1} parent=11 // pred_check
          %p272 = pneg %p82
        $region14: #{tpu_custom_call.1} parent=11 // pred_check_branch
          %274 = sbr.rel (%p272) target = $region16
        $region15: #{tpu_custom_call.1} parent=11 // pred_region
          %s276 = ssub.s32 512, 512
          %277 = vsyncadd [#allocation8], %s276
          %s278 = sshll.u32 [#allocation7], 4
          %s279 = int_to_ptr.vmem [resolvable:$true] %s278
          %284 = dma.hbm_to_vmem [thread:$0]  %s1, 512, %s279, [#allocation8], 128, 128, 8
        $region16: #{tpu_custom_call.1} parent=11 // pred_fallthru
          _
        // Predicated region
        $region17: #{tpu_custom_call.1} parent=11 // pred_check
          %p285 = pneg %p103
        $region18: #{tpu_custom_call.1} parent=11 // pred_check_branch
          %287 = sbr.rel (%p285) target = $region20
        $region19: #{tpu_custom_call.1} parent=11 // pred_region
          %s289 = ssub.s32 512, 512
          %290 = vsyncadd [#allocation8], %s289
          %s291 = sshll.u32 [#allocation9], 4
          %s292 = int_to_ptr.vmem [resolvable:$true] %s291
          %297 = dma.hbm_to_vmem [thread:$0]  %s2, 512, %s292, [#allocation8], 128, 128, 8
        $region20: #{tpu_custom_call.1} parent=11 // pred_fallthru
          _
        // Predicated region
        $region21: #{tpu_custom_call.1} parent=11 // pred_check
          %p298 = pneg %p124
        $region22: #{tpu_custom_call.1} parent=11 // pred_check_branch
          %300 = sbr.rel (%p298) target = $region24
        $region23: #{tpu_custom_call.1} parent=11 // pred_region
          %s302 = ssub.s32 512, 512
          %303 = vsyncadd [#allocation11], %s302
          %s304 = sshll.u32 [#allocation10], 4
          %s305 = int_to_ptr.vmem [resolvable:$true] %s304
          %310 = dma.hbm_to_vmem [thread:$0]  %s3, 512, %s305, [#allocation11], 128, 128, 8
        $region24: #{tpu_custom_call.1} parent=11 // pred_fallthru
          _
        // Predicated region
        $region25: #{tpu_custom_call.1} parent=11 // pred_check
          %p311 = pneg %p145
        $region26: #{tpu_custom_call.1} parent=11 // pred_check_branch
          %313 = sbr.rel (%p311) target = $region28
        $region27: #{tpu_custom_call.1} parent=11 // pred_region
          _
        $region28: #{tpu_custom_call.1} parent=11 // pred_fallthru
          _
        // Predicated region
        $region29: #{tpu_custom_call.1} parent=11 // pred_check
          %p314 = pneg %p166
        $region30: #{tpu_custom_call.1} parent=11 // pred_check_branch
          %316 = sbr.rel (%p314) target = $region32
        $region31: #{tpu_custom_call.1} parent=11 // pred_region
          _
        $region32: #{tpu_custom_call.1} parent=11 // pred_fallthru
          _
        // Predicated region
        $region33: #{tpu_custom_call.1} parent=11 // pred_check
          %p317 = pneg %p187
        $region34: #{tpu_custom_call.1} parent=11 // pred_check_branch
          %319 = sbr.rel (%p317) target = $region36
        $region35: #{tpu_custom_call.1} parent=11 // pred_region
          _
        $region36: #{tpu_custom_call.1} parent=11 // pred_fallthru
          _
        // Predicated region
        $region37: #{tpu_custom_call.1} parent=11 // pred_check
          %p320 = pneg %p208
        $region38: #{tpu_custom_call.1} parent=11 // pred_check_branch
          %322 = sbr.rel (%p320) target = $region40
        $region39: #{tpu_custom_call.1} parent=11 // pred_region
          %s324 = ssub.s32 512, 512
          %325 = vsyncadd [#allocation11], %s324
          %s326 = sshll.u32 [#allocation12], 4
          %s327 = int_to_ptr.vmem [resolvable:$true] %s326
          %332 = dma.hbm_to_vmem [thread:$0]  %s7, 512, %s327, [#allocation11], 128, 128, 8
        $region40: #{tpu_custom_call.1} parent=11 // pred_fallthru
          _
        // Predicated region
        $region41: #{tpu_custom_call.1} parent=11 // pred_check
          %p333 = pneg %p229
        $region42: #{tpu_custom_call.1} parent=11 // pred_check_branch
          %335 = sbr.rel (%p333) target = $region44
        $region43: #{tpu_custom_call.1} parent=11 // pred_region
          _
        $region44: #{tpu_custom_call.1} parent=11 // pred_fallthru
          _
      $region12: #{tpu_custom_call.1} parent=5 // pred_fallthru
        _
      %p336 = scmp.lt.s32.totalorder %s23, 2
      // Predicated region
      $region45: #{tpu_custom_call.1} parent=5 // pred_check
        %p337 = pneg %p336
      $region46: #{tpu_custom_call.1} parent=5 // pred_check_branch
        %339 = sbr.rel (%p337) target = $region48
      $region47: #{tpu_custom_call.1} parent=5 // pred_region
        // Predicated region
        $region49: #{tpu_custom_call.1} parent=47 // pred_check
          %p340 = pneg %p55
        $region50: #{tpu_custom_call.1} parent=47 // pred_check_branch
          %342 = sbr.rel (%p340) target = $region52
        $region51: #{tpu_custom_call.1} parent=47 // pred_region
          %s343 = sand.u32 %s45, 1
          %s344 = scalar_lea.sflag [#allocation5], %s343
          %s345 = sand.u32 %s45, 1
          %s346 = smul.addr %s345, 8
          %s347 = scalar_lea.vmem [#allocation4], %s346
          %s349 = ssub.s32 128, 128
          %350 = vsyncadd %s344, %s349
          %s351 = smul.addr %s30, 128
          %s352 = scalar_lea.hbm %s0, %s351
          %s354 = sshll.u32 %s347, 4
          %s355 = int_to_ptr.vmem [resolvable:$true] %s354
          %357 = dma.hbm_to_vmem [thread:$0]  %s352, 128, %s355, %s344
        $region52: #{tpu_custom_call.1} parent=47 // pred_fallthru
          _
      $region48: #{tpu_custom_call.1} parent=5 // pred_fallthru
        _
      %p358 = scmp.le.s32.totalorder 1, %s23
      %p359 = scmp.lt.s32.totalorder %s23, 3
      %p360 = pnand %p358, %p359
      %p361 = pneg %p360
      // Predicated region
      $region53: #{tpu_custom_call.1} parent=5 // pred_check
        _
      $region54: #{tpu_custom_call.1} parent=5 // pred_check_branch
        %363 = sbr.rel (%p360) target = $region56
      $region55: #{tpu_custom_call.1} parent=5 // pred_region
        %s364 = ssub.s32 %s23, 1
        %s365 = sand.u32 %s48, 1
        %s366 = scalar_lea.sflag [#allocation5], %s365
        %s367 = sand.u32 %s48, 1
        %s368 = smul.addr %s367, 8
        %s369 = scalar_lea.vmem [#allocation4], %s368
        // Predicated region
        $region57: #{tpu_custom_call.1} parent=55 // pred_check
          %p370 = pneg %p61
        $region58: #{tpu_custom_call.1} parent=55 // pred_check_branch
          %372 = sbr.rel (%p370) target = $region60
        $region59: #{tpu_custom_call.1} parent=55 // pred_region
          %373 = dma.done %s366, 128
        $region60: #{tpu_custom_call.1} parent=55 // pred_fallthru
          _
        // Predicated region
        $region61: #{tpu_custom_call.1} parent=55 // pred_check
          %p374 = pneg %p82
        $region62: #{tpu_custom_call.1} parent=55 // pred_check_branch
          %376 = sbr.rel (%p374) target = $region64
        $region63: #{tpu_custom_call.1} parent=55 // pred_region
          %377 = dma.done [#allocation8], 512
        $region64: #{tpu_custom_call.1} parent=55 // pred_fallthru
          _
        // Predicated region
        $region65: #{tpu_custom_call.1} parent=55 // pred_check
          %p378 = pneg %p103
        $region66: #{tpu_custom_call.1} parent=55 // pred_check_branch
          %380 = sbr.rel (%p378) target = $region68
        $region67: #{tpu_custom_call.1} parent=55 // pred_region
          %381 = dma.done [#allocation8], 512
        $region68: #{tpu_custom_call.1} parent=55 // pred_fallthru
          _
        // Predicated region
        $region69: #{tpu_custom_call.1} parent=55 // pred_check
          %p382 = pneg %p124
        $region70: #{tpu_custom_call.1} parent=55 // pred_check_branch
          %384 = sbr.rel (%p382) target = $region72
        $region71: #{tpu_custom_call.1} parent=55 // pred_region
          %385 = dma.done [#allocation11], 512
        $region72: #{tpu_custom_call.1} parent=55 // pred_fallthru
          _
        // Predicated region
        $region73: #{tpu_custom_call.1} parent=55 // pred_check
          %p386 = pneg %p208
        $region74: #{tpu_custom_call.1} parent=55 // pred_check_branch
          %388 = sbr.rel (%p386) target = $region76
        $region75: #{tpu_custom_call.1} parent=55 // pred_region
          %389 = dma.done [#allocation11], 512
        $region76: #{tpu_custom_call.1} parent=55 // pred_fallthru
          _
        %s390 = sand.u32 %s48, 1
        %s391 = scalar_lea.sflag [#allocation5], %s390
        %s392 = sand.u32 %s48, 1
        %s393 = smul.addr %s392, 8
        %s394 = scalar_lea.vmem [#allocation4], %s393
        %p395 = pneg %p61
        %p396 = pneg %p58
        %p397 = pneg %p82
        %p398 = pneg %p79
        %p399 = pneg %p103
        %p400 = pneg %p100
        %p401 = pneg %p124
        %p402 = pneg %p121
        %p403 = pneg %p145
        %p404 = pneg %p142
        %p405 = pneg %p166
        %p406 = pneg %p163
        %p407 = pneg %p187
        %p408 = pneg %p184
        %p409 = pneg %p208
        %p410 = pneg %p205
        %p411 = pneg %p229
        %p412 = pneg %p226
        %p413 = pneg %p257
        %p414 = pneg %p254
        %s415 = sand.u32 %s244, 1
        %s416 = scalar_lea.sflag [#allocation6], %s415
        %s417 = sand.u32 %s244, 1
        %s418 = smul.addr %s417, 8
        %s419 = scalar_lea.vmem [#allocation13], %s418
        %p420 = scmp.eq.s32.totalorder %s33, 0
        // Predicated region
        $region77: #{tpu_custom_call.1} parent=55 // pred_check
          %p421 = pneg %p420
        $region78: #{tpu_custom_call.1} parent=55 // pred_check_branch
          %423 = sbr.rel (%p421) target = $region80
        $region79: #{tpu_custom_call.1} parent=55 // pred_region
          %v424 = vld [vmem:[%s369] sm:$0xff]
          %v425 = vld [vmem:[#allocation9] sm:$0xff]
          %v426 = vld [vmem:[#allocation9 + $0x8] sm:$0xff]
          %v427 = vld [vmem:[#allocation9 + $0x10] sm:$0xff]
          %v428 = vld [vmem:[#allocation9 + $0x18] sm:$0xff]
          %v429 = vld [vmem:[%s5] sm:$0x1]
          %v431 = vlaneseq
          %v432 = vshrl.u32 %v431, 7
          %v433 = vsub.s32 0, %v432
          %v434 = vrot.slane %v429, %v433
          %vm436 = vcmask 261120
          %v438 = vsel %vm436, %v424, 0
          %440 = vmatprep.subr.mxu0 0.0
          %441 = vmatpush1.msra.mxu0 0.0
          %442 = vmatprep.subr.mxu0 0.0
          %443 = vmatpush1.msra.mxu0 0.0
          %444 = vmatprep.subr.mxu0 0.0
          %445 = vmatpush1.msra.mxu0 0.0
          %446 = vmatprep.subr.mxu0 0.0
          %447 = vmatpush1.msra.mxu0 0.0
          %448 = vmatprep.subr.mxu0 0.0
          %449 = vmatpush1.msra.mxu0 0.0
          %450 = vmatprep.subr.mxu0 0.0
          %451 = vmatpush1.msra.mxu0 0.0
          %452 = vmatprep.subr.mxu0 0.0
          %453 = vmatpush1.msra.mxu0 0.0
          %454 = vmatprep.subr.mxu0 0.0
          %455 = vmatpush1.msra.mxu0 0.0
          %456 = vmatprep.subr.mxu0 0.0
          %457 = vmatpush1.msra.mxu0 0.0
          %458 = vmatprep.subr.mxu0 0.0
          %459 = vmatpush1.msra.mxu0 0.0
          %460 = vmatprep.subr.mxu0 0.0
          %461 = vmatpush1.msra.mxu0 0.0
          %462 = vmatprep.subr.mxu0 0.0
          %463 = vmatpush1.msra.mxu0 0.0
          %464 = vmatprep.subr.mxu0 0.0
          %465 = vmatpush1.msra.mxu0 %v428
          %466 = vmatprep.subr.mxu0 0.0
          %467 = vmatpush1.msra.mxu0 %v427
          %468 = vmatprep.subr.mxu0 0.0
          %469 = vmatpush1.msra.mxu0 %v426
          %470 = vmatprep.subr.mxu0 0.0
          %471 = vmatpush1.msra.mxu0 %v425
          %472 = vmatprep.subr.mxu0 0.0
          %473 = vmatpush2.msra.mxu0 0.0
          %474 = vmatprep.subr.mxu0 0.0
          %475 = vmatpush2.msra.mxu0 0.0
          %476 = vmatprep.subr.mxu0 0.0
          %477 = vmatpush2.msra.mxu0 0.0
          %478 = vmatprep.subr.mxu0 0.0
          %479 = vmatpush2.msra.mxu0 0.0
          %480 = vmatprep.subr.mxu0 0.0
          %481 = vmatpush2.msra.mxu0 0.0
          %482 = vmatprep.subr.mxu0 0.0
          %483 = vmatpush2.msra.mxu0 0.0
          %484 = vmatprep.subr.mxu0 0.0
          %485 = vmatpush2.msra.mxu0 0.0
          %486 = vmatprep.subr.mxu0 0.0
          %487 = vmatpush2.msra.mxu0 0.0
          %488 = vmatprep.subr.mxu0 0.0
          %489 = vmatpush2.msra.mxu0 0.0
          %490 = vmatprep.subr.mxu0 0.0
          %491 = vmatpush2.msra.mxu0 0.0
          %492 = vmatprep.subr.mxu0 0.0
          %493 = vmatpush2.msra.mxu0 0.0
          %494 = vmatprep.subr.mxu0 0.0
          %495 = vmatpush2.msra.mxu0 0.0
          %496 = vmatprep.subr.mxu0 0.0
          %497 = vmatpush2.msra.mxu0 0.0
          %498 = vmatprep.subr.mxu0 0.0
          %499 = vmatpush2.msra.mxu0 0.0
          %500 = vmatprep.subr.mxu0 0.0
          %501 = vmatpush2.msra.mxu0 0.0
          %502 = vmatprep.subr.mxu0 0.0
          %503 = vmatpush2.msra.mxu0 0.0
          %504 = vmatprep.mubr.f32.mxu0 0.0
          %505 = vmatmul.mubr.f32.gmra.mxu0 %v438
          %v506 = vpop.f32.mrf.mxu0
          %v507 = vadd.f32 %v434, %v506
          %v508 = vpop.f32.mrf.mxu0
          %509 = vdwg.mxu0
          %510 = vst.msk [vmem:[#allocation2] sm:$0xff] %vm436, %v507
          %v511 = vld [vmem:[#allocation10] sm:$0xff]
          %v512 = vld [vmem:[#allocation10 + $0x8] sm:$0xff]
          %v513 = vld [vmem:[#allocation10 + $0x10] sm:$0xff]
          %v514 = vld [vmem:[#allocation10 + $0x18] sm:$0xff]
          %v515 = vld [vmem:[%s6] sm:$0x1]
          %v517 = vlaneseq
          %v518 = vshrl.u32 %v517, 7
          %v519 = vsub.s32 0, %v518
          %v520 = vrot.slane %v515, %v519
          %522 = vmatprep.subr.mxu0 0.0
          %523 = vmatpush1.msra.mxu0 0.0
          %524 = vmatprep.subr.mxu0 0.0
          %525 = vmatpush1.msra.mxu0 0.0
          %526 = vmatprep.subr.mxu0 0.0
          %527 = vmatpush1.msra.mxu0 0.0
          %528 = vmatprep.subr.mxu0 0.0
          %529 = vmatpush1.msra.mxu0 0.0
          %530 = vmatprep.subr.mxu0 0.0
          %531 = vmatpush1.msra.mxu0 0.0
          %532 = vmatprep.subr.mxu0 0.0
          %533 = vmatpush1.msra.mxu0 0.0
          %534 = vmatprep.subr.mxu0 0.0
          %535 = vmatpush1.msra.mxu0 0.0
          %536 = vmatprep.subr.mxu0 0.0
          %537 = vmatpush1.msra.mxu0 0.0
          %538 = vmatprep.subr.mxu0 0.0
          %539 = vmatpush1.msra.mxu0 0.0
          %540 = vmatprep.subr.mxu0 0.0
          %541 = vmatpush1.msra.mxu0 0.0
          %542 = vmatprep.subr.mxu0 0.0
          %543 = vmatpush1.msra.mxu0 0.0
          %544 = vmatprep.subr.mxu0 0.0
          %545 = vmatpush1.msra.mxu0 0.0
          %546 = vmatprep.subr.mxu0 0.0
          %547 = vmatpush1.msra.mxu0 %v514
          %548 = vmatprep.subr.mxu0 0.0
          %549 = vmatpush1.msra.mxu0 %v513
          %550 = vmatprep.subr.mxu0 0.0
          %551 = vmatpush1.msra.mxu0 %v512
          %552 = vmatprep.subr.mxu0 0.0
          %553 = vmatpush1.msra.mxu0 %v511
          %554 = vmatprep.subr.mxu0 0.0
          %555 = vmatpush2.msra.mxu0 0.0
          %556 = vmatprep.subr.mxu0 0.0
          %557 = vmatpush2.msra.mxu0 0.0
          %558 = vmatprep.subr.mxu0 0.0
          %559 = vmatpush2.msra.mxu0 0.0
          %560 = vmatprep.subr.mxu0 0.0
          %561 = vmatpush2.msra.mxu0 0.0
          %562 = vmatprep.subr.mxu0 0.0
          %563 = vmatpush2.msra.mxu0 0.0
          %564 = vmatprep.subr.mxu0 0.0
          %565 = vmatpush2.msra.mxu0 0.0
          %566 = vmatprep.subr.mxu0 0.0
          %567 = vmatpush2.msra.mxu0 0.0
          %568 = vmatprep.subr.mxu0 0.0
          %569 = vmatpush2.msra.mxu0 0.0
          %570 = vmatprep.subr.mxu0 0.0
          %571 = vmatpush2.msra.mxu0 0.0
          %572 = vmatprep.subr.mxu0 0.0
          %573 = vmatpush2.msra.mxu0 0.0
          %574 = vmatprep.subr.mxu0 0.0
          %575 = vmatpush2.msra.mxu0 0.0
          %576 = vmatprep.subr.mxu0 0.0
          %577 = vmatpush2.msra.mxu0 0.0
          %578 = vmatprep.subr.mxu0 0.0
          %579 = vmatpush2.msra.mxu0 0.0
          %580 = vmatprep.subr.mxu0 0.0
          %581 = vmatpush2.msra.mxu0 0.0
          %582 = vmatprep.subr.mxu0 0.0
          %583 = vmatpush2.msra.mxu0 0.0
          %584 = vmatprep.subr.mxu0 0.0
          %585 = vmatpush2.msra.mxu0 0.0
          %586 = vmatprep.mubr.f32.mxu0 0.0
          %587 = vmatmul.mubr.f32.gmra.mxu0 %v438
          %v588 = vpop.f32.mrf.mxu0
          %v589 = vadd.f32 %v520, %v588
          %v590 = vpop.f32.mrf.mxu0
          %591 = vdwg.mxu0
          %592 = vst.msk [vmem:[#allocation3] sm:$0xff] %vm436, %v589
        $region80: #{tpu_custom_call.1} parent=55 // pred_fallthru
          _
        %v593 = vld [vmem:[%s369] sm:$0xff]
        %v594 = vld [vmem:[#allocation7] sm:$0xff]
        %v595 = vld [vmem:[#allocation7 + $0x8] sm:$0xff]
        %v596 = vld [vmem:[#allocation7 + $0x10] sm:$0xff]
        %v597 = vld [vmem:[#allocation7 + $0x18] sm:$0xff]
        %v598 = vld [vmem:[%s4] sm:$0x1]
        %v600 = vlaneseq
        %v601 = vshrl.u32 %v600, 7
        %v602 = vsub.s32 0, %v601
        %v603 = vrot.slane %v598, %v602
        %vm605 = vcmask 261120
        %v607 = vsel %vm605, %v593, 0
        %609 = vmatprep.subr.mxu0 0.0
        %610 = vmatpush1.msra.mxu0 0.0
        %611 = vmatprep.subr.mxu0 0.0
        %612 = vmatpush1.msra.mxu0 0.0
        %613 = vmatprep.subr.mxu0 0.0
        %614 = vmatpush1.msra.mxu0 0.0
        %615 = vmatprep.subr.mxu0 0.0
        %616 = vmatpush1.msra.mxu0 0.0
        %617 = vmatprep.subr.mxu0 0.0
        %618 = vmatpush1.msra.mxu0 0.0
        %619 = vmatprep.subr.mxu0 0.0
        %620 = vmatpush1.msra.mxu0 0.0
        %621 = vmatprep.subr.mxu0 0.0
        %622 = vmatpush1.msra.mxu0 0.0
        %623 = vmatprep.subr.mxu0 0.0
        %624 = vmatpush1.msra.mxu0 0.0
        %625 = vmatprep.subr.mxu0 0.0
        %626 = vmatpush1.msra.mxu0 0.0
        %627 = vmatprep.subr.mxu0 0.0
        %628 = vmatpush1.msra.mxu0 0.0
        %629 = vmatprep.subr.mxu0 0.0
        %630 = vmatpush1.msra.mxu0 0.0
        %631 = vmatprep.subr.mxu0 0.0
        %632 = vmatpush1.msra.mxu0 0.0
        %633 = vmatprep.subr.mxu0 0.0
        %634 = vmatpush1.msra.mxu0 %v597
        %635 = vmatprep.subr.mxu0 0.0
        %636 = vmatpush1.msra.mxu0 %v596
        %637 = vmatprep.subr.mxu0 0.0
        %638 = vmatpush1.msra.mxu0 %v595
        %639 = vmatprep.subr.mxu0 0.0
        %640 = vmatpush1.msra.mxu0 %v594
        %641 = vmatprep.subr.mxu0 0.0
        %642 = vmatpush2.msra.mxu0 0.0
        %643 = vmatprep.subr.mxu0 0.0
        %644 = vmatpush2.msra.mxu0 0.0
        %645 = vmatprep.subr.mxu0 0.0
        %646 = vmatpush2.msra.mxu0 0.0
        %647 = vmatprep.subr.mxu0 0.0
        %648 = vmatpush2.msra.mxu0 0.0
        %649 = vmatprep.subr.mxu0 0.0
        %650 = vmatpush2.msra.mxu0 0.0
        %651 = vmatprep.subr.mxu0 0.0
        %652 = vmatpush2.msra.mxu0 0.0
        %653 = vmatprep.subr.mxu0 0.0
        %654 = vmatpush2.msra.mxu0 0.0
        %655 = vmatprep.subr.mxu0 0.0
        %656 = vmatpush2.msra.mxu0 0.0
        %657 = vmatprep.subr.mxu0 0.0
        %658 = vmatpush2.msra.mxu0 0.0
        %659 = vmatprep.subr.mxu0 0.0
        %660 = vmatpush2.msra.mxu0 0.0
        %661 = vmatprep.subr.mxu0 0.0
        %662 = vmatpush2.msra.mxu0 0.0
        %663 = vmatprep.subr.mxu0 0.0
        %664 = vmatpush2.msra.mxu0 0.0
        %665 = vmatprep.subr.mxu0 0.0
        %666 = vmatpush2.msra.mxu0 0.0
        %667 = vmatprep.subr.mxu0 0.0
        %668 = vmatpush2.msra.mxu0 0.0
        %669 = vmatprep.subr.mxu0 0.0
        %670 = vmatpush2.msra.mxu0 0.0
        %671 = vmatprep.subr.mxu0 0.0
        %672 = vmatpush2.msra.mxu0 0.0
        %673 = vmatprep.mubr.f32.mxu0 0.0
        %674 = vmatmul.mubr.f32.gmra.mxu0 %v607
        %v675 = vpop.f32.mrf.mxu0
        %v676 = vadd.f32 %v603, %v675
        %v677 = vpop.f32.mrf.mxu0
        %678 = vdwg.mxu0
        %v679 = vld [vmem:[#allocation2] sm:$0xff]
        %vm680 = vcmask 64512
        %v682 = vsel %vm680, %v676, 0
        %v685 = vsel %vm680, %v679, 0
        %687 = vmatprep.subr.mxu0 0.0
        %688 = vmatpush1.xpose.msra.mxu0 0.0
        %689 = vmatprep.subr.mxu0 0.0
        %690 = vmatpush1.xpose.msra.mxu0 0.0
        %691 = vmatprep.subr.mxu0 0.0
        %692 = vmatpush1.xpose.msra.mxu0 0.0
        %693 = vmatprep.subr.mxu0 0.0
        %694 = vmatpush1.xpose.msra.mxu0 0.0
        %695 = vmatprep.subr.mxu0 0.0
        %696 = vmatpush1.xpose.msra.mxu0 0.0
        %697 = vmatprep.subr.mxu0 0.0
        %698 = vmatpush1.xpose.msra.mxu0 0.0
        %699 = vmatprep.subr.mxu0 0.0
        %700 = vmatpush1.xpose.msra.mxu0 0.0
        %701 = vmatprep.subr.mxu0 0.0
        %702 = vmatpush1.xpose.msra.mxu0 0.0
        %703 = vmatprep.subr.mxu0 0.0
        %704 = vmatpush1.xpose.msra.mxu0 0.0
        %705 = vmatprep.subr.mxu0 0.0
        %706 = vmatpush1.xpose.msra.mxu0 0.0
        %707 = vmatprep.subr.mxu0 0.0
        %708 = vmatpush1.xpose.msra.mxu0 0.0
        %709 = vmatprep.subr.mxu0 0.0
        %710 = vmatpush1.xpose.msra.mxu0 0.0
        %711 = vmatprep.subr.mxu0 0.0
        %712 = vmatpush1.xpose.msra.mxu0 0.0
        %713 = vmatprep.subr.mxu0 0.0
        %714 = vmatpush1.xpose.msra.mxu0 0.0
        %715 = vmatprep.subr.mxu0 0.0
        %716 = vmatpush1.xpose.msra.mxu0 0.0
        %717 = vmatprep.subr.mxu0 0.0
        %718 = vmatpush1.xpose.msra.mxu0 %v685
        %719 = vmatprep.subr.mxu0 0.0
        %720 = vmatpush2.xpose.msra.mxu0 0.0
        %721 = vmatprep.subr.mxu0 0.0
        %722 = vmatpush2.xpose.msra.mxu0 0.0
        %723 = vmatprep.subr.mxu0 0.0
        %724 = vmatpush2.xpose.msra.mxu0 0.0
        %725 = vmatprep.subr.mxu0 0.0
        %726 = vmatpush2.xpose.msra.mxu0 0.0
        %727 = vmatprep.subr.mxu0 0.0
        %728 = vmatpush2.xpose.msra.mxu0 0.0
        %729 = vmatprep.subr.mxu0 0.0
        %730 = vmatpush2.xpose.msra.mxu0 0.0
        %731 = vmatprep.subr.mxu0 0.0
        %732 = vmatpush2.xpose.msra.mxu0 0.0
        %733 = vmatprep.subr.mxu0 0.0
        %734 = vmatpush2.xpose.msra.mxu0 0.0
        %735 = vmatprep.subr.mxu0 0.0
        %736 = vmatpush2.xpose.msra.mxu0 0.0
        %737 = vmatprep.subr.mxu0 0.0
        %738 = vmatpush2.xpose.msra.mxu0 0.0
        %739 = vmatprep.subr.mxu0 0.0
        %740 = vmatpush2.xpose.msra.mxu0 0.0
        %741 = vmatprep.subr.mxu0 0.0
        %742 = vmatpush2.xpose.msra.mxu0 0.0
        %743 = vmatprep.subr.mxu0 0.0
        %744 = vmatpush2.xpose.msra.mxu0 0.0
        %745 = vmatprep.subr.mxu0 0.0
        %746 = vmatpush2.xpose.msra.mxu0 0.0
        %747 = vmatprep.subr.mxu0 0.0
        %748 = vmatpush2.xpose.msra.mxu0 0.0
        %749 = vmatprep.subr.mxu0 0.0
        %750 = vmatpush2.xpose.msra.mxu0 0.0
        %751 = vmatprep.mubr.f32.mxu0 0.0
        %752 = vmatmul.mubr.f32.gmra.mxu0 %v682
        %v753 = vpop.f32.mrf.mxu0
        %v754 = vadd.f32 0.0, %v753
        %v755 = vpop.f32.mrf.mxu0
        %756 = vdwg.mxu0
        %v757 = vsel %vm680, %v754, -inf
        %758 = vmax.xlane.f32.xlu0 %v757
        %v759 = vpop.xlane.xlu0 %758
        %v760 = vsub.f32 %v754, %v759
        %v761 = vmul.f32 %v760, 1.442695
        %v762 = vpow.pop %v761
        %v763 = vsel %vm680, %v762, 0.0
        %764 = vadd.xlane.f32.xlu0 %v763
        %v765 = vpop.xlane.xlu0 %764
        %v766 = vrcp.pop %v765
        %v767 = vmul.f32 %v762, %v766
        %v768 = vld [vmem:[#allocation3] sm:$0xff]
        %v770 = vsel %vm680, %v767, 0
        %772 = vmatprep.subr.mxu0 0.0
        %773 = vmatpush1.msra.mxu0 0.0
        %774 = vmatprep.subr.mxu0 0.0
        %775 = vmatpush1.msra.mxu0 0.0
        %776 = vmatprep.subr.mxu0 0.0
        %777 = vmatpush1.msra.mxu0 0.0
        %778 = vmatprep.subr.mxu0 0.0
        %779 = vmatpush1.msra.mxu0 0.0
        %780 = vmatprep.subr.mxu0 0.0
        %781 = vmatpush1.msra.mxu0 0.0
        %782 = vmatprep.subr.mxu0 0.0
        %783 = vmatpush1.msra.mxu0 0.0
        %784 = vmatprep.subr.mxu0 0.0
        %785 = vmatpush1.msra.mxu0 0.0
        %786 = vmatprep.subr.mxu0 0.0
        %787 = vmatpush1.msra.mxu0 0.0
        %788 = vmatprep.subr.mxu0 0.0
        %789 = vmatpush1.msra.mxu0 0.0
        %790 = vmatprep.subr.mxu0 0.0
        %791 = vmatpush1.msra.mxu0 0.0
        %792 = vmatprep.subr.mxu0 0.0
        %793 = vmatpush1.msra.mxu0 0.0
        %794 = vmatprep.subr.mxu0 0.0
        %795 = vmatpush1.msra.mxu0 0.0
        %796 = vmatprep.subr.mxu0 0.0
        %797 = vmatpush1.msra.mxu0 0.0
        %798 = vmatprep.subr.mxu0 0.0
        %799 = vmatpush1.msra.mxu0 0.0
        %800 = vmatprep.subr.mxu0 0.0
        %801 = vmatpush1.msra.mxu0 0.0
        %802 = vmatprep.subr.mxu0 0.0
        %803 = vmatpush1.msra.mxu0 %v768
        %804 = vmatprep.subr.mxu0 0.0
        %805 = vmatpush2.msra.mxu0 0.0
        %806 = vmatprep.subr.mxu0 0.0
        %807 = vmatpush2.msra.mxu0 0.0
        %808 = vmatprep.subr.mxu0 0.0
        %809 = vmatpush2.msra.mxu0 0.0
        %810 = vmatprep.subr.mxu0 0.0
        %811 = vmatpush2.msra.mxu0 0.0
        %812 = vmatprep.subr.mxu0 0.0
        %813 = vmatpush2.msra.mxu0 0.0
        %814 = vmatprep.subr.mxu0 0.0
        %815 = vmatpush2.msra.mxu0 0.0
        %816 = vmatprep.subr.mxu0 0.0
        %817 = vmatpush2.msra.mxu0 0.0
        %818 = vmatprep.subr.mxu0 0.0
        %819 = vmatpush2.msra.mxu0 0.0
        %820 = vmatprep.subr.mxu0 0.0
        %821 = vmatpush2.msra.mxu0 0.0
        %822 = vmatprep.subr.mxu0 0.0
        %823 = vmatpush2.msra.mxu0 0.0
        %824 = vmatprep.subr.mxu0 0.0
        %825 = vmatpush2.msra.mxu0 0.0
        %826 = vmatprep.subr.mxu0 0.0
        %827 = vmatpush2.msra.mxu0 0.0
        %828 = vmatprep.subr.mxu0 0.0
        %829 = vmatpush2.msra.mxu0 0.0
        %830 = vmatprep.subr.mxu0 0.0
        %831 = vmatpush2.msra.mxu0 0.0
        %832 = vmatprep.subr.mxu0 0.0
        %833 = vmatpush2.msra.mxu0 0.0
        %834 = vmatprep.subr.mxu0 0.0
        %835 = vmatpush2.msra.mxu0 0.0
        %836 = vmatprep.mubr.f32.mxu0 0.0
        %837 = vmatmul.mubr.f32.gmra.mxu0 %v770
        %v838 = vpop.f32.mrf.mxu0
        %v839 = vadd.f32 0.0, %v838
        %v840 = vpop.f32.mrf.mxu0
        %841 = vdwg.mxu0
        %v842 = vld [vmem:[#allocation12] sm:$0xff]
        %843 = vrot.lane.b32.xlu0 %v676, 120
        %v844 = vpop.permute.xlu0 %843
        %845 = vrot.lane.b32.xlu0 %v679, 120
        %v846 = vpop.permute.xlu0 %845
        %v847 = vsel %vm680, %v844, 0
        %v849 = vsel %vm680, %v846, 0
        %851 = vmatprep.subr.mxu0 0.0
        %852 = vmatpush1.xpose.msra.mxu0 0.0
        %853 = vmatprep.subr.mxu0 0.0
        %854 = vmatpush1.xpose.msra.mxu0 0.0
        %855 = vmatprep.subr.mxu0 0.0
        %856 = vmatpush1.xpose.msra.mxu0 0.0
        %857 = vmatprep.subr.mxu0 0.0
        %858 = vmatpush1.xpose.msra.mxu0 0.0
        %859 = vmatprep.subr.mxu0 0.0
        %860 = vmatpush1.xpose.msra.mxu0 0.0
        %861 = vmatprep.subr.mxu0 0.0
        %862 = vmatpush1.xpose.msra.mxu0 0.0
        %863 = vmatprep.subr.mxu0 0.0
        %864 = vmatpush1.xpose.msra.mxu0 0.0
        %865 = vmatprep.subr.mxu0 0.0
        %866 = vmatpush1.xpose.msra.mxu0 0.0
        %867 = vmatprep.subr.mxu0 0.0
        %868 = vmatpush1.xpose.msra.mxu0 0.0
        %869 = vmatprep.subr.mxu0 0.0
        %870 = vmatpush1.xpose.msra.mxu0 0.0
        %871 = vmatprep.subr.mxu0 0.0
        %872 = vmatpush1.xpose.msra.mxu0 0.0
        %873 = vmatprep.subr.mxu0 0.0
        %874 = vmatpush1.xpose.msra.mxu0 0.0
        %875 = vmatprep.subr.mxu0 0.0
        %876 = vmatpush1.xpose.msra.mxu0 0.0
        %877 = vmatprep.subr.mxu0 0.0
        %878 = vmatpush1.xpose.msra.mxu0 0.0
        %879 = vmatprep.subr.mxu0 0.0
        %880 = vmatpush1.xpose.msra.mxu0 0.0
        %881 = vmatprep.subr.mxu0 0.0
        %882 = vmatpush1.xpose.msra.mxu0 %v849
        %883 = vmatprep.subr.mxu0 0.0
        %884 = vmatpush2.xpose.msra.mxu0 0.0
        %885 = vmatprep.subr.mxu0 0.0
        %886 = vmatpush2.xpose.msra.mxu0 0.0
        %887 = vmatprep.subr.mxu0 0.0
        %888 = vmatpush2.xpose.msra.mxu0 0.0
        %889 = vmatprep.subr.mxu0 0.0
        %890 = vmatpush2.xpose.msra.mxu0 0.0
        %891 = vmatprep.subr.mxu0 0.0
        %892 = vmatpush2.xpose.msra.mxu0 0.0
        %893 = vmatprep.subr.mxu0 0.0
        %894 = vmatpush2.xpose.msra.mxu0 0.0
        %895 = vmatprep.subr.mxu0 0.0
        %896 = vmatpush2.xpose.msra.mxu0 0.0
        %897 = vmatprep.subr.mxu0 0.0
        %898 = vmatpush2.xpose.msra.mxu0 0.0
        %899 = vmatprep.subr.mxu0 0.0
        %900 = vmatpush2.xpose.msra.mxu0 0.0
        %901 = vmatprep.subr.mxu0 0.0
        %902 = vmatpush2.xpose.msra.mxu0 0.0
        %903 = vmatprep.subr.mxu0 0.0
        %904 = vmatpush2.xpose.msra.mxu0 0.0
        %905 = vmatprep.subr.mxu0 0.0
        %906 = vmatpush2.xpose.msra.mxu0 0.0
        %907 = vmatprep.subr.mxu0 0.0
        %908 = vmatpush2.xpose.msra.mxu0 0.0
        %909 = vmatprep.subr.mxu0 0.0
        %910 = vmatpush2.xpose.msra.mxu0 0.0
        %911 = vmatprep.subr.mxu0 0.0
        %912 = vmatpush2.xpose.msra.mxu0 0.0
        %913 = vmatprep.subr.mxu0 0.0
        %914 = vmatpush2.xpose.msra.mxu0 0.0
        %915 = vmatprep.mubr.f32.mxu0 0.0
        %916 = vmatmul.mubr.f32.gmra.mxu0 %v847
        %v917 = vpop.f32.mrf.mxu0
        %v918 = vadd.f32 0.0, %v917
        %v919 = vpop.f32.mrf.mxu0
        %920 = vdwg.mxu0
        %v921 = vsel %vm680, %v918, -inf
        %922 = vmax.xlane.f32.xlu0 %v921
        %v923 = vpop.xlane.xlu0 %922
        %v924 = vsub.f32 %v918, %v923
        %v925 = vmul.f32 %v924, 1.442695
        %v926 = vpow.pop %v925
        %v927 = vsel %vm680, %v926, 0.0
        %928 = vadd.xlane.f32.xlu0 %v927
        %v929 = vpop.xlane.xlu0 %928
        %v930 = vrcp.pop %v929
        %v931 = vmul.f32 %v926, %v930
        %933 = vrot.lane.b32.xlu0 %v768, 120
        %v934 = vpop.permute.xlu0 %933
        %v937 = vsel %vm680, %v931, 0
        %939 = vmatprep.subr.mxu0 0.0
        %940 = vmatpush1.msra.mxu0 0.0
        %941 = vmatprep.subr.mxu0 0.0
        %942 = vmatpush1.msra.mxu0 0.0
        %943 = vmatprep.subr.mxu0 0.0
        %944 = vmatpush1.msra.mxu0 0.0
        %945 = vmatprep.subr.mxu0 0.0
        %946 = vmatpush1.msra.mxu0 0.0
        %947 = vmatprep.subr.mxu0 0.0
        %948 = vmatpush1.msra.mxu0 0.0
        %949 = vmatprep.subr.mxu0 0.0
        %950 = vmatpush1.msra.mxu0 0.0
        %951 = vmatprep.subr.mxu0 0.0
        %952 = vmatpush1.msra.mxu0 0.0
        %953 = vmatprep.subr.mxu0 0.0
        %954 = vmatpush1.msra.mxu0 0.0
        %955 = vmatprep.subr.mxu0 0.0
        %956 = vmatpush1.msra.mxu0 0.0
        %957 = vmatprep.subr.mxu0 0.0
        %958 = vmatpush1.msra.mxu0 0.0
        %959 = vmatprep.subr.mxu0 0.0
        %960 = vmatpush1.msra.mxu0 0.0
        %961 = vmatprep.subr.mxu0 0.0
        %962 = vmatpush1.msra.mxu0 0.0
        %963 = vmatprep.subr.mxu0 0.0
        %964 = vmatpush1.msra.mxu0 0.0
        %965 = vmatprep.subr.mxu0 0.0
        %966 = vmatpush1.msra.mxu0 0.0
        %967 = vmatprep.subr.mxu0 0.0
        %968 = vmatpush1.msra.mxu0 0.0
        %969 = vmatprep.subr.mxu0 0.0
        %970 = vmatpush1.msra.mxu0 %v934
        %971 = vmatprep.subr.mxu0 0.0
        %972 = vmatpush2.msra.mxu0 0.0
        %973 = vmatprep.subr.mxu0 0.0
        %974 = vmatpush2.msra.mxu0 0.0
        %975 = vmatprep.subr.mxu0 0.0
        %976 = vmatpush2.msra.mxu0 0.0
        %977 = vmatprep.subr.mxu0 0.0
        %978 = vmatpush2.msra.mxu0 0.0
        %979 = vmatprep.subr.mxu0 0.0
        %980 = vmatpush2.msra.mxu0 0.0
        %981 = vmatprep.subr.mxu0 0.0
        %982 = vmatpush2.msra.mxu0 0.0
        %983 = vmatprep.subr.mxu0 0.0
        %984 = vmatpush2.msra.mxu0 0.0
        %985 = vmatprep.subr.mxu0 0.0
        %986 = vmatpush2.msra.mxu0 0.0
        %987 = vmatprep.subr.mxu0 0.0
        %988 = vmatpush2.msra.mxu0 0.0
        %989 = vmatprep.subr.mxu0 0.0
        %990 = vmatpush2.msra.mxu0 0.0
        %991 = vmatprep.subr.mxu0 0.0
        %992 = vmatpush2.msra.mxu0 0.0
        %993 = vmatprep.subr.mxu0 0.0
        %994 = vmatpush2.msra.mxu0 0.0
        %995 = vmatprep.subr.mxu0 0.0
        %996 = vmatpush2.msra.mxu0 0.0
        %997 = vmatprep.subr.mxu0 0.0
        %998 = vmatpush2.msra.mxu0 0.0
        %999 = vmatprep.subr.mxu0 0.0
        %1000 = vmatpush2.msra.mxu0 0.0
        %1001 = vmatprep.subr.mxu0 0.0
        %1002 = vmatpush2.msra.mxu0 0.0
        %1003 = vmatprep.mubr.f32.mxu0 0.0
        %1004 = vmatmul.mubr.f32.gmra.mxu0 %v937
        %v1005 = vpop.f32.mrf.mxu0
        %v1006 = vadd.f32 0.0, %v1005
        %v1007 = vpop.f32.mrf.mxu0
        %1008 = vdwg.mxu0
        %v1009 = vld [vmem:[#allocation12 + $0x8] sm:$0xff]
        %v1011 = vsel %vm680, %v1006, 0
        %1013 = vmatprep.subr.mxu0 0.0
        %1014 = vmatpush1.msra.mxu0 0.0
        %1015 = vmatprep.subr.mxu0 0.0
        %1016 = vmatpush1.msra.mxu0 0.0
        %1017 = vmatprep.subr.mxu0 0.0
        %1018 = vmatpush1.msra.mxu0 0.0
        %1019 = vmatprep.subr.mxu0 0.0
        %1020 = vmatpush1.msra.mxu0 0.0
        %1021 = vmatprep.subr.mxu0 0.0
        %1022 = vmatpush1.msra.mxu0 0.0
        %1023 = vmatprep.subr.mxu0 0.0
        %1024 = vmatpush1.msra.mxu0 0.0
        %1025 = vmatprep.subr.mxu0 0.0
        %1026 = vmatpush1.msra.mxu0 0.0
        %1027 = vmatprep.subr.mxu0 0.0
        %1028 = vmatpush1.msra.mxu0 0.0
        %1029 = vmatprep.subr.mxu0 0.0
        %1030 = vmatpush1.msra.mxu0 0.0
        %1031 = vmatprep.subr.mxu0 0.0
        %1032 = vmatpush1.msra.mxu0 0.0
        %1033 = vmatprep.subr.mxu0 0.0
        %1034 = vmatpush1.msra.mxu0 0.0
        %1035 = vmatprep.subr.mxu0 0.0
        %1036 = vmatpush1.msra.mxu0 0.0
        %1037 = vmatprep.subr.mxu0 0.0
        %1038 = vmatpush1.msra.mxu0 0.0
        %1039 = vmatprep.subr.mxu0 0.0
        %1040 = vmatpush1.msra.mxu0 0.0
        %1041 = vmatprep.subr.mxu0 0.0
        %1042 = vmatpush1.msra.mxu0 0.0
        %1043 = vmatprep.subr.mxu0 0.0
        %1044 = vmatpush1.msra.mxu0 %v1009
        %1045 = vmatprep.subr.mxu0 0.0
        %1046 = vmatpush2.msra.mxu0 0.0
        %1047 = vmatprep.subr.mxu0 0.0
        %1048 = vmatpush2.msra.mxu0 0.0
        %1049 = vmatprep.subr.mxu0 0.0
        %1050 = vmatpush2.msra.mxu0 0.0
        %1051 = vmatprep.subr.mxu0 0.0
        %1052 = vmatpush2.msra.mxu0 0.0
        %1053 = vmatprep.subr.mxu0 0.0
        %1054 = vmatpush2.msra.mxu0 0.0
        %1055 = vmatprep.subr.mxu0 0.0
        %1056 = vmatpush2.msra.mxu0 0.0
        %1057 = vmatprep.subr.mxu0 0.0
        %1058 = vmatpush2.msra.mxu0 0.0
        %1059 = vmatprep.subr.mxu0 0.0
        %1060 = vmatpush2.msra.mxu0 0.0
        %1061 = vmatprep.subr.mxu0 0.0
        %1062 = vmatpush2.msra.mxu0 0.0
        %1063 = vmatprep.subr.mxu0 0.0
        %1064 = vmatpush2.msra.mxu0 0.0
        %1065 = vmatprep.subr.mxu0 0.0
        %1066 = vmatpush2.msra.mxu0 0.0
        %1067 = vmatprep.subr.mxu0 0.0
        %1068 = vmatpush2.msra.mxu0 0.0
        %1069 = vmatprep.subr.mxu0 0.0
        %1070 = vmatpush2.msra.mxu0 0.0
        %1071 = vmatprep.subr.mxu0 0.0
        %1072 = vmatpush2.msra.mxu0 0.0
        %1073 = vmatprep.subr.mxu0 0.0
        %1074 = vmatpush2.msra.mxu0 0.0
        %1075 = vmatprep.subr.mxu0 0.0
        %1076 = vmatpush2.msra.mxu0 0.0
        %1077 = vmatprep.mubr.f32.mxu0 0.0
        %1078 = vmatmul.mubr.f32.gmra.mxu0 %v1011
        %v1079 = vpop.f32.mrf.mxu0
        %v1080 = vadd.f32 0.0, %v1079
        %v1081 = vpop.f32.mrf.mxu0
        %1082 = vdwg.mxu0
        %v1084 = vsel %vm680, %v839, 0
        %1086 = vmatprep.subr.mxu0 0.0
        %1087 = vmatpush1.msra.mxu0 0.0
        %1088 = vmatprep.subr.mxu0 0.0
        %1089 = vmatpush1.msra.mxu0 0.0
        %1090 = vmatprep.subr.mxu0 0.0
        %1091 = vmatpush1.msra.mxu0 0.0
        %1092 = vmatprep.subr.mxu0 0.0
        %1093 = vmatpush1.msra.mxu0 0.0
        %1094 = vmatprep.subr.mxu0 0.0
        %1095 = vmatpush1.msra.mxu0 0.0
        %1096 = vmatprep.subr.mxu0 0.0
        %1097 = vmatpush1.msra.mxu0 0.0
        %1098 = vmatprep.subr.mxu0 0.0
        %1099 = vmatpush1.msra.mxu0 0.0
        %1100 = vmatprep.subr.mxu0 0.0
        %1101 = vmatpush1.msra.mxu0 0.0
        %1102 = vmatprep.subr.mxu0 0.0
        %1103 = vmatpush1.msra.mxu0 0.0
        %1104 = vmatprep.subr.mxu0 0.0
        %1105 = vmatpush1.msra.mxu0 0.0
        %1106 = vmatprep.subr.mxu0 0.0
        %1107 = vmatpush1.msra.mxu0 0.0
        %1108 = vmatprep.subr.mxu0 0.0
        %1109 = vmatpush1.msra.mxu0 0.0
        %1110 = vmatprep.subr.mxu0 0.0
        %1111 = vmatpush1.msra.mxu0 0.0
        %1112 = vmatprep.subr.mxu0 0.0
        %1113 = vmatpush1.msra.mxu0 0.0
        %1114 = vmatprep.subr.mxu0 0.0
        %1115 = vmatpush1.msra.mxu0 0.0
        %1116 = vmatprep.subr.mxu0 0.0
        %1117 = vmatpush1.msra.mxu0 %v842
        %1118 = vmatprep.subr.mxu0 0.0
        %1119 = vmatpush2.msra.mxu0 0.0
        %1120 = vmatprep.subr.mxu0 0.0
        %1121 = vmatpush2.msra.mxu0 0.0
        %1122 = vmatprep.subr.mxu0 0.0
        %1123 = vmatpush2.msra.mxu0 0.0
        %1124 = vmatprep.subr.mxu0 0.0
        %1125 = vmatpush2.msra.mxu0 0.0
        %1126 = vmatprep.subr.mxu0 0.0
        %1127 = vmatpush2.msra.mxu0 0.0
        %1128 = vmatprep.subr.mxu0 0.0
        %1129 = vmatpush2.msra.mxu0 0.0
        %1130 = vmatprep.subr.mxu0 0.0
        %1131 = vmatpush2.msra.mxu0 0.0
        %1132 = vmatprep.subr.mxu0 0.0
        %1133 = vmatpush2.msra.mxu0 0.0
        %1134 = vmatprep.subr.mxu0 0.0
        %1135 = vmatpush2.msra.mxu0 0.0
        %1136 = vmatprep.subr.mxu0 0.0
        %1137 = vmatpush2.msra.mxu0 0.0
        %1138 = vmatprep.subr.mxu0 0.0
        %1139 = vmatpush2.msra.mxu0 0.0
        %1140 = vmatprep.subr.mxu0 0.0
        %1141 = vmatpush2.msra.mxu0 0.0
        %1142 = vmatprep.subr.mxu0 0.0
        %1143 = vmatpush2.msra.mxu0 0.0
        %1144 = vmatprep.subr.mxu0 0.0
        %1145 = vmatpush2.msra.mxu0 0.0
        %1146 = vmatprep.subr.mxu0 0.0
        %1147 = vmatpush2.msra.mxu0 0.0
        %1148 = vmatprep.subr.mxu0 0.0
        %1149 = vmatpush2.msra.mxu0 0.0
        %1150 = vmatprep.mubr.f32.mxu0 0.0
        %1151 = vmatmul.mubr.f32.gmra.mxu0 %v1084
        %v1152 = vpop.f32.mrf.mxu0
        %v1153 = vadd.f32 %v1080, %v1152
        %v1154 = vpop.f32.mrf.mxu0
        %1155 = vdwg.mxu0
        %1156 = vrot.lane.b32.xlu0 %v676, 112
        %v1157 = vpop.permute.xlu0 %1156
        %1158 = vrot.lane.b32.xlu0 %v679, 112
        %v1159 = vpop.permute.xlu0 %1158
        %v1160 = vsel %vm680, %v1157, 0
        %v1162 = vsel %vm680, %v1159, 0
        %1164 = vmatprep.subr.mxu0 0.0
        %1165 = vmatpush1.xpose.msra.mxu0 0.0
        %1166 = vmatprep.subr.mxu0 0.0
        %1167 = vmatpush1.xpose.msra.mxu0 0.0
        %1168 = vmatprep.subr.mxu0 0.0
        %1169 = vmatpush1.xpose.msra.mxu0 0.0
        %1170 = vmatprep.subr.mxu0 0.0
        %1171 = vmatpush1.xpose.msra.mxu0 0.0
        %1172 = vmatprep.subr.mxu0 0.0
        %1173 = vmatpush1.xpose.msra.mxu0 0.0
        %1174 = vmatprep.subr.mxu0 0.0
        %1175 = vmatpush1.xpose.msra.mxu0 0.0
        %1176 = vmatprep.subr.mxu0 0.0
        %1177 = vmatpush1.xpose.msra.mxu0 0.0
        %1178 = vmatprep.subr.mxu0 0.0
        %1179 = vmatpush1.xpose.msra.mxu0 0.0
        %1180 = vmatprep.subr.mxu0 0.0
        %1181 = vmatpush1.xpose.msra.mxu0 0.0
        %1182 = vmatprep.subr.mxu0 0.0
        %1183 = vmatpush1.xpose.msra.mxu0 0.0
        %1184 = vmatprep.subr.mxu0 0.0
        %1185 = vmatpush1.xpose.msra.mxu0 0.0
        %1186 = vmatprep.subr.mxu0 0.0
        %1187 = vmatpush1.xpose.msra.mxu0 0.0
        %1188 = vmatprep.subr.mxu0 0.0
        %1189 = vmatpush1.xpose.msra.mxu0 0.0
        %1190 = vmatprep.subr.mxu0 0.0
        %1191 = vmatpush1.xpose.msra.mxu0 0.0
        %1192 = vmatprep.subr.mxu0 0.0
        %1193 = vmatpush1.xpose.msra.mxu0 0.0
        %1194 = vmatprep.subr.mxu0 0.0
        %1195 = vmatpush1.xpose.msra.mxu0 %v1162
        %1196 = vmatprep.subr.mxu0 0.0
        %1197 = vmatpush2.xpose.msra.mxu0 0.0
        %1198 = vmatprep.subr.mxu0 0.0
        %1199 = vmatpush2.xpose.msra.mxu0 0.0
        %1200 = vmatprep.subr.mxu0 0.0
        %1201 = vmatpush2.xpose.msra.mxu0 0.0
        %1202 = vmatprep.subr.mxu0 0.0
        %1203 = vmatpush2.xpose.msra.mxu0 0.0
        %1204 = vmatprep.subr.mxu0 0.0
        %1205 = vmatpush2.xpose.msra.mxu0 0.0
        %1206 = vmatprep.subr.mxu0 0.0
        %1207 = vmatpush2.xpose.msra.mxu0 0.0
        %1208 = vmatprep.subr.mxu0 0.0
        %1209 = vmatpush2.xpose.msra.mxu0 0.0
        %1210 = vmatprep.subr.mxu0 0.0
        %1211 = vmatpush2.xpose.msra.mxu0 0.0
        %1212 = vmatprep.subr.mxu0 0.0
        %1213 = vmatpush2.xpose.msra.mxu0 0.0
        %1214 = vmatprep.subr.mxu0 0.0
        %1215 = vmatpush2.xpose.msra.mxu0 0.0
        %1216 = vmatprep.subr.mxu0 0.0
        %1217 = vmatpush2.xpose.msra.mxu0 0.0
        %1218 = vmatprep.subr.mxu0 0.0
        %1219 = vmatpush2.xpose.msra.mxu0 0.0
        %1220 = vmatprep.subr.mxu0 0.0
        %1221 = vmatpush2.xpose.msra.mxu0 0.0
        %1222 = vmatprep.subr.mxu0 0.0
        %1223 = vmatpush2.xpose.msra.mxu0 0.0
        %1224 = vmatprep.subr.mxu0 0.0
        %1225 = vmatpush2.xpose.msra.mxu0 0.0
        %1226 = vmatprep.subr.mxu0 0.0
        %1227 = vmatpush2.xpose.msra.mxu0 0.0
        %1228 = vmatprep.mubr.f32.mxu0 0.0
        %1229 = vmatmul.mubr.f32.gmra.mxu0 %v1160
        %v1230 = vpop.f32.mrf.mxu0
        %v1231 = vadd.f32 0.0, %v1230
        %v1232 = vpop.f32.mrf.mxu0
        %1233 = vdwg.mxu0
        %v1234 = vsel %vm680, %v1231, -inf
        %1235 = vmax.xlane.f32.xlu0 %v1234
        %v1236 = vpop.xlane.xlu0 %1235
        %v1237 = vsub.f32 %v1231, %v1236
        %v1238 = vmul.f32 %v1237, 1.442695
        %v1239 = vpow.pop %v1238
        %v1240 = vsel %vm680, %v1239, 0.0
        %1241 = vadd.xlane.f32.xlu0 %v1240
        %v1242 = vpop.xlane.xlu0 %1241
        %v1243 = vrcp.pop %v1242
        %v1244 = vmul.f32 %v1239, %v1243
        %1245 = vrot.lane.b32.xlu0 %v768, 112
        %v1246 = vpop.permute.xlu0 %1245
        %v1249 = vsel %vm680, %v1244, 0
        %1251 = vmatprep.subr.mxu0 0.0
        %1252 = vmatpush1.msra.mxu0 0.0
        %1253 = vmatprep.subr.mxu0 0.0
        %1254 = vmatpush1.msra.mxu0 0.0
        %1255 = vmatprep.subr.mxu0 0.0
        %1256 = vmatpush1.msra.mxu0 0.0
        %1257 = vmatprep.subr.mxu0 0.0
        %1258 = vmatpush1.msra.mxu0 0.0
        %1259 = vmatprep.subr.mxu0 0.0
        %1260 = vmatpush1.msra.mxu0 0.0
        %1261 = vmatprep.subr.mxu0 0.0
        %1262 = vmatpush1.msra.mxu0 0.0
        %1263 = vmatprep.subr.mxu0 0.0
        %1264 = vmatpush1.msra.mxu0 0.0
        %1265 = vmatprep.subr.mxu0 0.0
        %1266 = vmatpush1.msra.mxu0 0.0
        %1267 = vmatprep.subr.mxu0 0.0
        %1268 = vmatpush1.msra.mxu0 0.0
        %1269 = vmatprep.subr.mxu0 0.0
        %1270 = vmatpush1.msra.mxu0 0.0
        %1271 = vmatprep.subr.mxu0 0.0
        %1272 = vmatpush1.msra.mxu0 0.0
        %1273 = vmatprep.subr.mxu0 0.0
        %1274 = vmatpush1.msra.mxu0 0.0
        %1275 = vmatprep.subr.mxu0 0.0
        %1276 = vmatpush1.msra.mxu0 0.0
        %1277 = vmatprep.subr.mxu0 0.0
        %1278 = vmatpush1.msra.mxu0 0.0
        %1279 = vmatprep.subr.mxu0 0.0
        %1280 = vmatpush1.msra.mxu0 0.0
        %1281 = vmatprep.subr.mxu0 0.0
        %1282 = vmatpush1.msra.mxu0 %v1246
        %1283 = vmatprep.subr.mxu0 0.0
        %1284 = vmatpush2.msra.mxu0 0.0
        %1285 = vmatprep.subr.mxu0 0.0
        %1286 = vmatpush2.msra.mxu0 0.0
        %1287 = vmatprep.subr.mxu0 0.0
        %1288 = vmatpush2.msra.mxu0 0.0
        %1289 = vmatprep.subr.mxu0 0.0
        %1290 = vmatpush2.msra.mxu0 0.0
        %1291 = vmatprep.subr.mxu0 0.0
        %1292 = vmatpush2.msra.mxu0 0.0
        %1293 = vmatprep.subr.mxu0 0.0
        %1294 = vmatpush2.msra.mxu0 0.0
        %1295 = vmatprep.subr.mxu0 0.0
        %1296 = vmatpush2.msra.mxu0 0.0
        %1297 = vmatprep.subr.mxu0 0.0
        %1298 = vmatpush2.msra.mxu0 0.0
        %1299 = vmatprep.subr.mxu0 0.0
        %1300 = vmatpush2.msra.mxu0 0.0
        %1301 = vmatprep.subr.mxu0 0.0
        %1302 = vmatpush2.msra.mxu0 0.0
        %1303 = vmatprep.subr.mxu0 0.0
        %1304 = vmatpush2.msra.mxu0 0.0
        %1305 = vmatprep.subr.mxu0 0.0
        %1306 = vmatpush2.msra.mxu0 0.0
        %1307 = vmatprep.subr.mxu0 0.0
        %1308 = vmatpush2.msra.mxu0 0.0
        %1309 = vmatprep.subr.mxu0 0.0
        %1310 = vmatpush2.msra.mxu0 0.0
        %1311 = vmatprep.subr.mxu0 0.0
        %1312 = vmatpush2.msra.mxu0 0.0
        %1313 = vmatprep.subr.mxu0 0.0
        %1314 = vmatpush2.msra.mxu0 0.0
        %1315 = vmatprep.mubr.f32.mxu0 0.0
        %1316 = vmatmul.mubr.f32.gmra.mxu0 %v1249
        %v1317 = vpop.f32.mrf.mxu0
        %v1318 = vadd.f32 0.0, %v1317
        %v1319 = vpop.f32.mrf.mxu0
        %1320 = vdwg.mxu0
        %v1321 = vld [vmem:[#allocation12 + $0x10] sm:$0xff]
        %v1323 = vsel %vm680, %v1318, 0
        %1325 = vmatprep.subr.mxu0 0.0
        %1326 = vmatpush1.msra.mxu0 0.0
        %1327 = vmatprep.subr.mxu0 0.0
        %1328 = vmatpush1.msra.mxu0 0.0
        %1329 = vmatprep.subr.mxu0 0.0
        %1330 = vmatpush1.msra.mxu0 0.0
        %1331 = vmatprep.subr.mxu0 0.0
        %1332 = vmatpush1.msra.mxu0 0.0
        %1333 = vmatprep.subr.mxu0 0.0
        %1334 = vmatpush1.msra.mxu0 0.0
        %1335 = vmatprep.subr.mxu0 0.0
        %1336 = vmatpush1.msra.mxu0 0.0
        %1337 = vmatprep.subr.mxu0 0.0
        %1338 = vmatpush1.msra.mxu0 0.0
        %1339 = vmatprep.subr.mxu0 0.0
        %1340 = vmatpush1.msra.mxu0 0.0
        %1341 = vmatprep.subr.mxu0 0.0
        %1342 = vmatpush1.msra.mxu0 0.0
        %1343 = vmatprep.subr.mxu0 0.0
        %1344 = vmatpush1.msra.mxu0 0.0
        %1345 = vmatprep.subr.mxu0 0.0
        %1346 = vmatpush1.msra.mxu0 0.0
        %1347 = vmatprep.subr.mxu0 0.0
        %1348 = vmatpush1.msra.mxu0 0.0
        %1349 = vmatprep.subr.mxu0 0.0
        %1350 = vmatpush1.msra.mxu0 0.0
        %1351 = vmatprep.subr.mxu0 0.0
        %1352 = vmatpush1.msra.mxu0 0.0
        %1353 = vmatprep.subr.mxu0 0.0
        %1354 = vmatpush1.msra.mxu0 0.0
        %1355 = vmatprep.subr.mxu0 0.0
        %1356 = vmatpush1.msra.mxu0 %v1321
        %1357 = vmatprep.subr.mxu0 0.0
        %1358 = vmatpush2.msra.mxu0 0.0
        %1359 = vmatprep.subr.mxu0 0.0
        %1360 = vmatpush2.msra.mxu0 0.0
        %1361 = vmatprep.subr.mxu0 0.0
        %1362 = vmatpush2.msra.mxu0 0.0
        %1363 = vmatprep.subr.mxu0 0.0
        %1364 = vmatpush2.msra.mxu0 0.0
        %1365 = vmatprep.subr.mxu0 0.0
        %1366 = vmatpush2.msra.mxu0 0.0
        %1367 = vmatprep.subr.mxu0 0.0
        %1368 = vmatpush2.msra.mxu0 0.0
        %1369 = vmatprep.subr.mxu0 0.0
        %1370 = vmatpush2.msra.mxu0 0.0
        %1371 = vmatprep.subr.mxu0 0.0
        %1372 = vmatpush2.msra.mxu0 0.0
        %1373 = vmatprep.subr.mxu0 0.0
        %1374 = vmatpush2.msra.mxu0 0.0
        %1375 = vmatprep.subr.mxu0 0.0
        %1376 = vmatpush2.msra.mxu0 0.0
        %1377 = vmatprep.subr.mxu0 0.0
        %1378 = vmatpush2.msra.mxu0 0.0
        %1379 = vmatprep.subr.mxu0 0.0
        %1380 = vmatpush2.msra.mxu0 0.0
        %1381 = vmatprep.subr.mxu0 0.0
        %1382 = vmatpush2.msra.mxu0 0.0
        %1383 = vmatprep.subr.mxu0 0.0
        %1384 = vmatpush2.msra.mxu0 0.0
        %1385 = vmatprep.subr.mxu0 0.0
        %1386 = vmatpush2.msra.mxu0 0.0
        %1387 = vmatprep.subr.mxu0 0.0
        %1388 = vmatpush2.msra.mxu0 0.0
        %1389 = vmatprep.mubr.f32.mxu0 0.0
        %1390 = vmatmul.mubr.f32.gmra.mxu0 %v1323
        %v1391 = vpop.f32.mrf.mxu0
        %v1392 = vadd.f32 0.0, %v1391
        %v1393 = vpop.f32.mrf.mxu0
        %1394 = vdwg.mxu0
        %v1395 = vadd.f32 %v1153, %v1392
        %1396 = vrot.lane.b32.xlu0 %v676, 104
        %v1397 = vpop.permute.xlu0 %1396
        %1398 = vrot.lane.b32.xlu0 %v679, 104
        %v1399 = vpop.permute.xlu0 %1398
        %v1400 = vsel %vm680, %v1397, 0
        %v1402 = vsel %vm680, %v1399, 0
        %1404 = vmatprep.subr.mxu0 0.0
        %1405 = vmatpush1.xpose.msra.mxu0 0.0
        %1406 = vmatprep.subr.mxu0 0.0
        %1407 = vmatpush1.xpose.msra.mxu0 0.0
        %1408 = vmatprep.subr.mxu0 0.0
        %1409 = vmatpush1.xpose.msra.mxu0 0.0
        %1410 = vmatprep.subr.mxu0 0.0
        %1411 = vmatpush1.xpose.msra.mxu0 0.0
        %1412 = vmatprep.subr.mxu0 0.0
        %1413 = vmatpush1.xpose.msra.mxu0 0.0
        %1414 = vmatprep.subr.mxu0 0.0
        %1415 = vmatpush1.xpose.msra.mxu0 0.0
        %1416 = vmatprep.subr.mxu0 0.0
        %1417 = vmatpush1.xpose.msra.mxu0 0.0
        %1418 = vmatprep.subr.mxu0 0.0
        %1419 = vmatpush1.xpose.msra.mxu0 0.0
        %1420 = vmatprep.subr.mxu0 0.0
        %1421 = vmatpush1.xpose.msra.mxu0 0.0
        %1422 = vmatprep.subr.mxu0 0.0
        %1423 = vmatpush1.xpose.msra.mxu0 0.0
        %1424 = vmatprep.subr.mxu0 0.0
        %1425 = vmatpush1.xpose.msra.mxu0 0.0
        %1426 = vmatprep.subr.mxu0 0.0
        %1427 = vmatpush1.xpose.msra.mxu0 0.0
        %1428 = vmatprep.subr.mxu0 0.0
        %1429 = vmatpush1.xpose.msra.mxu0 0.0
        %1430 = vmatprep.subr.mxu0 0.0
        %1431 = vmatpush1.xpose.msra.mxu0 0.0
        %1432 = vmatprep.subr.mxu0 0.0
        %1433 = vmatpush1.xpose.msra.mxu0 0.0
        %1434 = vmatprep.subr.mxu0 0.0
        %1435 = vmatpush1.xpose.msra.mxu0 %v1402
        %1436 = vmatprep.subr.mxu0 0.0
        %1437 = vmatpush2.xpose.msra.mxu0 0.0
        %1438 = vmatprep.subr.mxu0 0.0
        %1439 = vmatpush2.xpose.msra.mxu0 0.0
        %1440 = vmatprep.subr.mxu0 0.0
        %1441 = vmatpush2.xpose.msra.mxu0 0.0
        %1442 = vmatprep.subr.mxu0 0.0
        %1443 = vmatpush2.xpose.msra.mxu0 0.0
        %1444 = vmatprep.subr.mxu0 0.0
        %1445 = vmatpush2.xpose.msra.mxu0 0.0
        %1446 = vmatprep.subr.mxu0 0.0
        %1447 = vmatpush2.xpose.msra.mxu0 0.0
        %1448 = vmatprep.subr.mxu0 0.0
        %1449 = vmatpush2.xpose.msra.mxu0 0.0
        %1450 = vmatprep.subr.mxu0 0.0
        %1451 = vmatpush2.xpose.msra.mxu0 0.0
        %1452 = vmatprep.subr.mxu0 0.0
        %1453 = vmatpush2.xpose.msra.mxu0 0.0
        %1454 = vmatprep.subr.mxu0 0.0
        %1455 = vmatpush2.xpose.msra.mxu0 0.0
        %1456 = vmatprep.subr.mxu0 0.0
        %1457 = vmatpush2.xpose.msra.mxu0 0.0
        %1458 = vmatprep.subr.mxu0 0.0
        %1459 = vmatpush2.xpose.msra.mxu0 0.0
        %1460 = vmatprep.subr.mxu0 0.0
        %1461 = vmatpush2.xpose.msra.mxu0 0.0
        %1462 = vmatprep.subr.mxu0 0.0
        %1463 = vmatpush2.xpose.msra.mxu0 0.0
        %1464 = vmatprep.subr.mxu0 0.0
        %1465 = vmatpush2.xpose.msra.mxu0 0.0
        %1466 = vmatprep.subr.mxu0 0.0
        %1467 = vmatpush2.xpose.msra.mxu0 0.0
        %1468 = vmatprep.mubr.f32.mxu0 0.0
        %1469 = vmatmul.mubr.f32.gmra.mxu0 %v1400
        %v1470 = vpop.f32.mrf.mxu0
        %v1471 = vadd.f32 0.0, %v1470
        %v1472 = vpop.f32.mrf.mxu0
        %1473 = vdwg.mxu0
        %v1474 = vsel %vm680, %v1471, -inf
        %1475 = vmax.xlane.f32.xlu0 %v1474
        %v1476 = vpop.xlane.xlu0 %1475
        %v1477 = vsub.f32 %v1471, %v1476
        %v1478 = vmul.f32 %v1477, 1.442695
        %v1479 = vpow.pop %v1478
        %v1480 = vsel %vm680, %v1479, 0.0
        %1481 = vadd.xlane.f32.xlu0 %v1480
        %v1482 = vpop.xlane.xlu0 %1481
        %v1483 = vrcp.pop %v1482
        %v1484 = vmul.f32 %v1479, %v1483
        %1485 = vrot.lane.b32.xlu0 %v768, 104
        %v1486 = vpop.permute.xlu0 %1485
        %v1489 = vsel %vm680, %v1484, 0
        %1491 = vmatprep.subr.mxu0 0.0
        %1492 = vmatpush1.msra.mxu0 0.0
        %1493 = vmatprep.subr.mxu0 0.0
        %1494 = vmatpush1.msra.mxu0 0.0
        %1495 = vmatprep.subr.mxu0 0.0
        %1496 = vmatpush1.msra.mxu0 0.0
        %1497 = vmatprep.subr.mxu0 0.0
        %1498 = vmatpush1.msra.mxu0 0.0
        %1499 = vmatprep.subr.mxu0 0.0
        %1500 = vmatpush1.msra.mxu0 0.0
        %1501 = vmatprep.subr.mxu0 0.0
        %1502 = vmatpush1.msra.mxu0 0.0
        %1503 = vmatprep.subr.mxu0 0.0
        %1504 = vmatpush1.msra.mxu0 0.0
        %1505 = vmatprep.subr.mxu0 0.0
        %1506 = vmatpush1.msra.mxu0 0.0
        %1507 = vmatprep.subr.mxu0 0.0
        %1508 = vmatpush1.msra.mxu0 0.0
        %1509 = vmatprep.subr.mxu0 0.0
        %1510 = vmatpush1.msra.mxu0 0.0
        %1511 = vmatprep.subr.mxu0 0.0
        %1512 = vmatpush1.msra.mxu0 0.0
        %1513 = vmatprep.subr.mxu0 0.0
        %1514 = vmatpush1.msra.mxu0 0.0
        %1515 = vmatprep.subr.mxu0 0.0
        %1516 = vmatpush1.msra.mxu0 0.0
        %1517 = vmatprep.subr.mxu0 0.0
        %1518 = vmatpush1.msra.mxu0 0.0
        %1519 = vmatprep.subr.mxu0 0.0
        %1520 = vmatpush1.msra.mxu0 0.0
        %1521 = vmatprep.subr.mxu0 0.0
        %1522 = vmatpush1.msra.mxu0 %v1486
        %1523 = vmatprep.subr.mxu0 0.0
        %1524 = vmatpush2.msra.mxu0 0.0
        %1525 = vmatprep.subr.mxu0 0.0
        %1526 = vmatpush2.msra.mxu0 0.0
        %1527 = vmatprep.subr.mxu0 0.0
        %1528 = vmatpush2.msra.mxu0 0.0
        %1529 = vmatprep.subr.mxu0 0.0
        %1530 = vmatpush2.msra.mxu0 0.0
        %1531 = vmatprep.subr.mxu0 0.0
        %1532 = vmatpush2.msra.mxu0 0.0
        %1533 = vmatprep.subr.mxu0 0.0
        %1534 = vmatpush2.msra.mxu0 0.0
        %1535 = vmatprep.subr.mxu0 0.0
        %1536 = vmatpush2.msra.mxu0 0.0
        %1537 = vmatprep.subr.mxu0 0.0
        %1538 = vmatpush2.msra.mxu0 0.0
        %1539 = vmatprep.subr.mxu0 0.0
        %1540 = vmatpush2.msra.mxu0 0.0
        %1541 = vmatprep.subr.mxu0 0.0
        %1542 = vmatpush2.msra.mxu0 0.0
        %1543 = vmatprep.subr.mxu0 0.0
        %1544 = vmatpush2.msra.mxu0 0.0
        %1545 = vmatprep.subr.mxu0 0.0
        %1546 = vmatpush2.msra.mxu0 0.0
        %1547 = vmatprep.subr.mxu0 0.0
        %1548 = vmatpush2.msra.mxu0 0.0
        %1549 = vmatprep.subr.mxu0 0.0
        %1550 = vmatpush2.msra.mxu0 0.0
        %1551 = vmatprep.subr.mxu0 0.0
        %1552 = vmatpush2.msra.mxu0 0.0
        %1553 = vmatprep.subr.mxu0 0.0
        %1554 = vmatpush2.msra.mxu0 0.0
        %1555 = vmatprep.mubr.f32.mxu0 0.0
        %1556 = vmatmul.mubr.f32.gmra.mxu0 %v1489
        %v1557 = vpop.f32.mrf.mxu0
        %v1558 = vadd.f32 0.0, %v1557
        %v1559 = vpop.f32.mrf.mxu0
        %1560 = vdwg.mxu0
        %v1561 = vld [vmem:[#allocation12 + $0x18] sm:$0xff]
        %v1563 = vsel %vm680, %v1558, 0
        %1565 = vmatprep.subr.mxu0 0.0
        %1566 = vmatpush1.msra.mxu0 0.0
        %1567 = vmatprep.subr.mxu0 0.0
        %1568 = vmatpush1.msra.mxu0 0.0
        %1569 = vmatprep.subr.mxu0 0.0
        %1570 = vmatpush1.msra.mxu0 0.0
        %1571 = vmatprep.subr.mxu0 0.0
        %1572 = vmatpush1.msra.mxu0 0.0
        %1573 = vmatprep.subr.mxu0 0.0
        %1574 = vmatpush1.msra.mxu0 0.0
        %1575 = vmatprep.subr.mxu0 0.0
        %1576 = vmatpush1.msra.mxu0 0.0
        %1577 = vmatprep.subr.mxu0 0.0
        %1578 = vmatpush1.msra.mxu0 0.0
        %1579 = vmatprep.subr.mxu0 0.0
        %1580 = vmatpush1.msra.mxu0 0.0
        %1581 = vmatprep.subr.mxu0 0.0
        %1582 = vmatpush1.msra.mxu0 0.0
        %1583 = vmatprep.subr.mxu0 0.0
        %1584 = vmatpush1.msra.mxu0 0.0
        %1585 = vmatprep.subr.mxu0 0.0
        %1586 = vmatpush1.msra.mxu0 0.0
        %1587 = vmatprep.subr.mxu0 0.0
        %1588 = vmatpush1.msra.mxu0 0.0
        %1589 = vmatprep.subr.mxu0 0.0
        %1590 = vmatpush1.msra.mxu0 0.0
        %1591 = vmatprep.subr.mxu0 0.0
        %1592 = vmatpush1.msra.mxu0 0.0
        %1593 = vmatprep.subr.mxu0 0.0
        %1594 = vmatpush1.msra.mxu0 0.0
        %1595 = vmatprep.subr.mxu0 0.0
        %1596 = vmatpush1.msra.mxu0 %v1561
        %1597 = vmatprep.subr.mxu0 0.0
        %1598 = vmatpush2.msra.mxu0 0.0
        %1599 = vmatprep.subr.mxu0 0.0
        %1600 = vmatpush2.msra.mxu0 0.0
        %1601 = vmatprep.subr.mxu0 0.0
        %1602 = vmatpush2.msra.mxu0 0.0
        %1603 = vmatprep.subr.mxu0 0.0
        %1604 = vmatpush2.msra.mxu0 0.0
        %1605 = vmatprep.subr.mxu0 0.0
        %1606 = vmatpush2.msra.mxu0 0.0
        %1607 = vmatprep.subr.mxu0 0.0
        %1608 = vmatpush2.msra.mxu0 0.0
        %1609 = vmatprep.subr.mxu0 0.0
        %1610 = vmatpush2.msra.mxu0 0.0
        %1611 = vmatprep.subr.mxu0 0.0
        %1612 = vmatpush2.msra.mxu0 0.0
        %1613 = vmatprep.subr.mxu0 0.0
        %1614 = vmatpush2.msra.mxu0 0.0
        %1615 = vmatprep.subr.mxu0 0.0
        %1616 = vmatpush2.msra.mxu0 0.0
        %1617 = vmatprep.subr.mxu0 0.0
        %1618 = vmatpush2.msra.mxu0 0.0
        %1619 = vmatprep.subr.mxu0 0.0
        %1620 = vmatpush2.msra.mxu0 0.0
        %1621 = vmatprep.subr.mxu0 0.0
        %1622 = vmatpush2.msra.mxu0 0.0
        %1623 = vmatprep.subr.mxu0 0.0
        %1624 = vmatpush2.msra.mxu0 0.0
        %1625 = vmatprep.subr.mxu0 0.0
        %1626 = vmatpush2.msra.mxu0 0.0
        %1627 = vmatprep.subr.mxu0 0.0
        %1628 = vmatpush2.msra.mxu0 0.0
        %1629 = vmatprep.mubr.f32.mxu0 0.0
        %1630 = vmatmul.mubr.f32.gmra.mxu0 %v1563
        %v1631 = vpop.f32.mrf.mxu0
        %v1632 = vadd.f32 0.0, %v1631
        %v1633 = vpop.f32.mrf.mxu0
        %1634 = vdwg.mxu0
        %v1635 = vadd.f32 %v1395, %v1632
        %v1636 = vld [vmem:[%s8] sm:$0x1]
        %v1638 = vlaneseq
        %v1639 = vshrl.u32 %v1638, 7
        %v1640 = vsub.s32 0, %v1639
        %v1641 = vrot.slane %v1636, %v1640
        %v1643 = vadd.f32 %v1635, %v1641
        %1644 = vst [vmem:[%s419] sm:$0xff] %v1643
        %s1645 = sand.u32 %s244, 1
        %s1646 = scalar_lea.sflag [#allocation6], %s1645
        %s1647 = sand.u32 %s244, 1
        %s1648 = smul.addr %s1647, 8
        %s1649 = scalar_lea.vmem [#allocation13], %s1648
        // Predicated region
        $region81: #{tpu_custom_call.1} parent=55 // pred_check
          %p1650 = pneg %p254
        $region82: #{tpu_custom_call.1} parent=55 // pred_check_branch
          %1652 = sbr.rel (%p1650) target = $region84
        $region83: #{tpu_custom_call.1} parent=55 // pred_region
          %s1654 = ssub.s32 128, 128
          %1655 = vsyncadd %s1646, %s1654
          %s1656 = sadd.s32 %s33, %s32
          %s1657 = smul.addr %s1656, 128
          %s1658 = scalar_lea.hbm %s9, %s1657
          %s1660 = sshll.u32 %s1649, 4
          %s1661 = int_to_ptr.vmem [resolvable:$true] %s1660
          %1663 = dma.vmem_to_hbm [thread:$0]  %s1661, 128, %s1658, %s1646
        $region84: #{tpu_custom_call.1} parent=55 // pred_fallthru
          _
      $region56: #{tpu_custom_call.1} parent=5 // pred_fallthru
        _
      %p1664 = scmp.le.s32.totalorder 2, %s23
      // Predicated region
      $region85: #{tpu_custom_call.1} parent=5 // pred_check
        %p1665 = pneg %p1664
      $region86: #{tpu_custom_call.1} parent=5 // pred_check_branch
        %1667 = sbr.rel (%p1665) target = $region88
      $region87: #{tpu_custom_call.1} parent=5 // pred_region
        %s1668 = ssub.s32 %s23, 2
        // Predicated region
        $region89: #{tpu_custom_call.1} parent=87 // pred_check
          %p1669 = pneg %p260
        $region90: #{tpu_custom_call.1} parent=87 // pred_check_branch
          %1671 = sbr.rel (%p1669) target = $region92
        $region91: #{tpu_custom_call.1} parent=87 // pred_region
          %s1672 = sand.u32 %s245, 1
          %s1673 = scalar_lea.sflag [#allocation6], %s1672
          %s1674 = sand.u32 %s245, 1
          %s1675 = smul.addr %s1674, 8
          %s1676 = scalar_lea.vmem [#allocation13], %s1675
          %1677 = dma.done %s1673, 128
        $region92: #{tpu_custom_call.1} parent=87 // pred_fallthru
          _
      $region88: #{tpu_custom_call.1} parent=5 // pred_fallthru
        _
    $region6: #{tpu_custom_call.1} parent=1 // loop_footer
      %s27 = sadd.s32 1, %s23
    $region7: #{tpu_custom_call.1} parent=1 // loop_footer_branch
      %22 = sbr.rel target = $region3
    $region8: #{tpu_custom_call.1} parent=1 // loop_exit
      _
    %1678 = vsyncpa [#allocation5], 1
    %s1679 = scalar_lea.sflag [#allocation5], 1
    %1680 = vsyncpa %s1679, 1
    %1681 = vsyncpa [#allocation8], 1
    %1682 = vsyncpa [#allocation11], 1
    %1683 = vsyncpa [#allocation6], 1
    %s1684 = scalar_lea.sflag [#allocation6], 1
    %1685 = vsyncpa %s1684, 1

</llo_original>
